<compile_context>
chip_gen: v6e
topology: v6e:2x2x1
jax: 0.10.0
libtpu: 0.0.40
codegen_flags: <defaults>
</compile_context>

<pallas_src>
import functools

import jax
import jax.numpy as jnp
from jax.experimental import pallas as pl
from jax.experimental.pallas import tpu as pltpu

EPS = 1e-5


def _hardswish(x):
    return x * jnp.clip(x + 3.0, 0.0, 6.0) * (1.0 / 6.0)


def _hardsigmoid(x):
    return jnp.clip(x + 3.0, 0.0, 6.0) * (1.0 / 6.0)


def _inverted_residual_kernel(x_ref, wexp_ref, bexp_ref, wdw_ref, bdw_ref,
                              se1w_ref, se1b_ref, se2w_ref, se2b_ref,
                              wproj_ref, bproj_ref, o_ref,
                              *, nb, H, W, Cexp, mxu_dtype):
    R = nb * H
    WC = W * Cexp

    x = x_ref[...]                                    # (nb, H, W*Cin) f32, lane-dense
    WCin = x.shape[-1]
    x2d = x.reshape(R, WCin)                          # leading-dim merge only (free)

    # ---- 1x1 expand conv (BN1 folded) + hardswish -------------------------------
    # kron(I_W, w_exp) block-diagonal bf16 weight keeps activations lane-packed.
    h = jnp.dot(x2d.astype(mxu_dtype), wexp_ref[...],
                preferred_element_type=jnp.float32) + bexp_ref[...]
    h3 = _hardswish(h).reshape(nb, H, WC)             # (nb, H, W*Cexp)

    # ---- depthwise 3x3, stride 1, pad 1 (BN2 folded) + hardswish -----------------
    # Zero-fill neighbour shifts (static slices + concat): boundary handling needs
    # no iota / select masks and is exact at image edges and batch boundaries.
    zl = jnp.zeros((nb, H, Cexp), jnp.float32)
    h_wm = jnp.concatenate([zl, h3[:, :, :WC - Cexp]], axis=2)   # value at w-1
    h_wp = jnp.concatenate([h3[:, :, Cexp:], zl], axis=2)        # value at w+1

    wd = wdw_ref[...]                                 # (9, W*Cexp) f32, row = tap (kh,kw)

    def row_conv(kh):
        return (h_wm * wd[3 * kh + 0:3 * kh + 1, :]
                + h3 * wd[3 * kh + 1:3 * kh + 2, :]
                + h_wp * wd[3 * kh + 2:3 * kh + 3, :])

    zr = jnp.zeros((nb, 1, WC), jnp.float32)
    acc = row_conv(1) + bdw_ref[...]                              # centre row + bias
    r = row_conv(0)                                               # from row i-1
    acc = acc + jnp.concatenate([zr, r[:, :H - 1, :]], axis=1)
    r = row_conv(2)                                               # from row i+1
    acc = acc + jnp.concatenate([r[:, 1:, :], zr], axis=1)
    h3 = _hardswish(acc)                                          # (nb, H, WC)

    # ---- SqueezeExcitation --------------------------------------------------------
    # Global avg pool: H sum is a sublane reduce; the W-group sum and the 1/(H*W)
    # scale are folded into the pre-tiled FC1 weight (W*Cexp, Csq).
    colsum = jnp.sum(h3, axis=1)                                  # (nb, WC)
    s = jnp.dot(colsum, se1w_ref[...],
                preferred_element_type=jnp.float32) + se1b_ref[...]
    s = jnp.maximum(s, 0.0)
    s = jnp.dot(s, se2w_ref[...],
                preferred_element_type=jnp.float32) + se2b_ref[...]
    gate = _hardsigmoid(s)                                        # (nb, WC), repl. over W
    hg = h3 * gate[:, None, :]

    # ---- 1x1 project conv (BN3 folded, identity activation) + residual ------------
    out = jnp.dot(hg.reshape(R, WC).astype(mxu_dtype), wproj_ref[...],
                  preferred_element_type=jnp.float32) + bproj_ref[...]
    out = out + x2d                                  # residual path stays f32
    o_ref[...] = out.reshape(nb, H, WCin)            # lane-dense unmasked store


def inverted_residual(x_nchw, params, *, batch_tile=None,
                      weights_dtype=jnp.bfloat16, interpret=False):
    """x_nchw: (N, Cin, H, W) float32. Returns (N, Cout, H, W)."""
    (w_exp, bn1, w_dw, bn2, se1w, se1b, se2w, se2b, w_proj, bn3) = params
    N, Cin, H, W = x_nchw.shape
    Cexp = w_exp.shape[1]
    Cout = w_proj.shape[1]
    Csq = se1w.shape[1]
    assert Cin == Cout, "this config uses the residual connection (stride 1, Cin == Cout)"

    f32 = jnp.float32

    # ---- batch tile: generation-aware ----------------------------------------------
    if batch_tile is None:
        kind = ""
        try:
            kind = jax.devices()[0].device_kind.lower()
        except Exception:
            pass
        multi_tc = any(t in kind for t in ("v7", "v4", "v5p"))
        if multi_tc and N >= 2:
            # keep >= 2 (prefer >= 4) grid steps so both TensorCores get pipelined work
            target_steps = 4 if N >= 4 else 2
            batch_tile = max(1, N // target_steps)
        else:
            # single TensorCore: one big step (no per-step overhead, tall MXU LHS)
            batch_tile = N
        # cap the activation working set so ~10 live (nb*H, W*Cexp) f32 arrays fit VMEM
        per_img = H * W * Cexp * 4
        batch_tile = max(1, min(batch_tile, (8 << 20) // max(per_img, 1), N))
    while N % batch_tile:
        batch_tile -= 1
    nb = batch_tile

    # ---- fold eval-mode BatchNorm into conv weights / biases (trace time) ----------
    def fold(bn):
        g, b, m, v = bn[0], bn[1], bn[2], bn[3]
        s = g * jax.lax.rsqrt(v + EPS)
        return s, b - m * s

    s1, b1 = fold(bn1)
    s2, b2 = fold(bn2)
    s3, b3 = fold(bn3)
    w_exp_f = (w_exp * s1[None, :]).astype(f32)            # (Cin, Cexp)
    w_dw_f = (w_dw * s2[None, None, :]).astype(f32)        # (3, 3, Cexp)
    w_proj_f = (w_proj * s3[None, :]).astype(f32)          # (Cexp, Cout)

    # ---- lane-pack the weights (channels of every W column live on the lane axis) --
    eye_w = jnp.eye(W, dtype=f32)
    w_exp_p = jnp.kron(eye_w, w_exp_f).astype(weights_dtype)    # (W*Cin,  W*Cexp) bf16
    w_proj_p = jnp.kron(eye_w, w_proj_f).astype(weights_dtype)  # (W*Cexp, W*Cout) bf16
    b_exp_p = jnp.tile(b1, W)[None, :].astype(f32)              # (1, W*Cexp)
    b_dw_p = jnp.tile(b2, W)[None, :].astype(f32)               # (1, W*Cexp)
    b_proj_p = jnp.tile(b3, W)[None, :].astype(f32)             # (1, W*Cout)
    w_dw_p = jnp.tile(w_dw_f.reshape(9, Cexp), (1, W))          # (9, W*Cexp)
    se1w_p = jnp.tile(se1w.astype(f32), (W, 1)) * (1.0 / (H * W))   # (W*Cexp, Csq)
    se1b_p = se1b.reshape(1, Csq).astype(f32)                   # (1, Csq)
    se2w_p = jnp.tile(se2w.astype(f32), (1, W))                 # (Csq, W*Cexp)
    se2b_p = jnp.tile(se2b.reshape(1, Cexp).astype(f32), (1, W))    # (1, W*Cexp)

    # Lane-dense activations: NCHW -> NHWC -> (N, H, W*C); W*Cin = W*Cout = 256.
    x_p = jnp.transpose(x_nchw.astype(f32), (0, 2, 3, 1)).reshape(N, H, W * Cin)

    plist = [w_exp_p, b_exp_p, w_dw_p, b_dw_p, se1w_p, se1b_p, se2w_p, se2b_p,
             w_proj_p, b_proj_p]

    # All weights are 2-D, full-array blocks, grid-invariant (fetched once).
    weight_specs = [pl.BlockSpec(p.shape, lambda n: (0, 0)) for p in plist]
    in_specs = [pl.BlockSpec((nb, H, W * Cin), lambda n: (n, 0, 0))] + weight_specs
    out_spec = pl.BlockSpec((nb, H, W * Cout), lambda n: (n, 0, 0))

    # Explicit VMEM budget: weights (double-buffer safe) + activation working set.
    weight_bytes = sum(int(p.size) * p.dtype.itemsize for p in plist)
    block_bytes = nb * H * W * Cexp * 4
    vmem_limit = int(min(max(2 * weight_bytes + 14 * block_bytes + (2 << 20), 8 << 20),
                         48 << 20))

    kernel = functools.partial(_inverted_residual_kernel, nb=nb, H=H, W=W,
                               Cexp=Cexp, mxu_dtype=weights_dtype)

    out = pl.pallas_call(
        kernel,
        out_shape=jax.ShapeDtypeStruct((N, H, W * Cout), f32),
        grid=(N // nb,),
        in_specs=in_specs,
        out_specs=out_spec,
        compiler_params=pltpu.CompilerParams(
            dimension_semantics=("parallel",),
            vmem_limit_bytes=vmem_limit),
        interpret=interpret,
    )(x_p, *plist)

    return jnp.transpose(out.reshape(N, H, W, Cout), (0, 3, 1, 2))


def reference(x_nchw, params):
    """Plain-JAX f32 reference (unfolded BN, NHWC) for verification."""
    (w_exp, bn1, w_dw, bn2, se1w, se1b, se2w, se2b, w_proj, bn3) = params
    x = jnp.transpose(x_nchw, (0, 2, 3, 1)).astype(jnp.float32)
    N, H, W, Cin = x.shape
    Cexp = w_exp.shape[1]

    def bn(v, p):
        return (v - p[2]) * (p[0] * jax.lax.rsqrt(p[3] + EPS)) + p[1]

    h = jnp.einsum('nhwc,cd->nhwd', x, w_exp)
    h = _hardswish(bn(h, bn1))
    hp = jnp.pad(h, ((0, 0), (1, 1), (1, 1), (0, 0)))
    acc = jnp.zeros((N, H, W, Cexp), jnp.float32)
    for kh in range(3):
        for kw in range(3):
            acc = acc + hp[:, kh:kh + H, kw:kw + W, :] * w_dw[kh, kw]
    h = _hardswish(bn(acc, bn2))
    pooled = jnp.mean(h, axis=(1, 2))                              # (N, Cexp)
    s = jnp.maximum(pooled @ se1w + se1b, 0.0)
    s = s @ se2w + se2b
    h = h * _hardsigmoid(s)[:, None, None, :]
    out = jnp.einsum('nhwc,cd->nhwd', h, w_proj)
    out = bn(out, bn3) + x
    return jnp.transpose(out, (0, 3, 1, 2))


def make_params(key, Cin=16, Cexp=32, Cout=16, Csq=8):
    ks = jax.random.split(key, 16)

    def bn_params(k, C):
        k1, k2, k3, k4 = jax.random.split(k, 4)
        gamma = 1.0 + 0.05 * jax.random.normal(k1, (C,), jnp.float32)
        beta = 0.05 * jax.random.normal(k2, (C,), jnp.float32)
        mean = 0.05 * jax.random.normal(k3, (C,), jnp.float32)
        var = 1.0 + 0.1 * jax.random.uniform(k4, (C,), jnp.float32)
        return jnp.stack([gamma, beta, mean, var], axis=0)          # (4, C)

    w_exp = 0.1 * jax.random.normal(ks[0], (Cin, Cexp), jnp.float32)
    bn1 = bn_params(ks[1], Cexp)
    w_dw = 0.1 * jax.random.normal(ks[2], (3, 3, Cexp), jnp.float32)
    bn2 = bn_params(ks[3], Cexp)
    se1w = 0.1 * jax.random.normal(ks[4], (Cexp, Csq), jnp.float32)
    se1b = 0.05 * jax.random.normal(ks[5], (1, Csq), jnp.float32)
    se2w = 0.1 * jax.random.normal(ks[6], (Csq, Cexp), jnp.float32)
    se2b = 0.05 * jax.random.normal(ks[7], (1, Cexp), jnp.float32)
    w_proj = 0.1 * jax.random.normal(ks[8], (Cexp, Cout), jnp.float32)
    bn3 = bn_params(ks[9], Cout)
    return (w_exp, bn1, w_dw, bn2, se1w, se1b, se2w, se2b, w_proj, bn3)


if __name__ == "__main__":
    key = jax.random.PRNGKey(0)
    kx, kp = jax.random.split(key)

    N, Cin, H, W = 2, 16, 16, 16
    x = jax.random.normal(kx, (N, Cin, H, W), jnp.float32)          # NCHW like PyTorch
    params = make_params(kp, Cin=16, Cexp=32, Cout=16, Csq=8)

    out = jax.block_until_ready(inverted_residual(x, params))

    ref = reference(x, params)
    assert out.shape == (N, 16, H, W)
    err = float(jnp.max(jnp.abs(out - ref)))
    # bf16 MXU operands (halved weight DMA per the perf review) vs f32 reference:
    # relaxed tolerance; with weights_dtype=jnp.float32 the kernel matches to ~1e-5.
    assert err < 2e-2, f"mismatch vs reference (max abs err={err})"

    print("KERNEL_OK")
</pallas_src>

<mosaic_0001>
module attributes {stable_mosaic.version = 11 : i64} {
  func.func @_inverted_residual_kernel(%arg0: i32, %arg1: memref<2x16x256xf32, #tpu.memory_space<vmem>>, %arg2: memref<256x512xbf16, #tpu.memory_space<vmem>>, %arg3: memref<1x512xf32, #tpu.memory_space<vmem>>, %arg4: memref<9x512xf32, #tpu.memory_space<vmem>>, %arg5: memref<1x512xf32, #tpu.memory_space<vmem>>, %arg6: memref<512x8xf32, #tpu.memory_space<vmem>>, %arg7: memref<1x8xf32, #tpu.memory_space<vmem>>, %arg8: memref<8x512xf32, #tpu.memory_space<vmem>>, %arg9: memref<1x512xf32, #tpu.memory_space<vmem>>, %arg10: memref<512x256xbf16, #tpu.memory_space<vmem>>, %arg11: memref<1x256xf32, #tpu.memory_space<vmem>>, %arg12: memref<2x16x256xf32, #tpu.memory_space<vmem>>) attributes {dimension_semantics = [#tpu.dimension_semantics<parallel>], iteration_bounds = array<i64: 1>, scalar_prefetch = 0 : i64, scratch_operands = 0 : i64, tpu.core_type = #tpu.core_type<tc>, window_params = [{transform_indices = @transform_0, window_bounds = array<i64: 2, 16, 256>}, {pipeline_mode = #tpu.pipeline_mode<synchronous>, transform_indices = @transform_1, window_bounds = array<i64: 256, 512>}, {pipeline_mode = #tpu.pipeline_mode<synchronous>, transform_indices = @transform_2, window_bounds = array<i64: 1, 512>}, {pipeline_mode = #tpu.pipeline_mode<synchronous>, transform_indices = @transform_3, window_bounds = array<i64: 9, 512>}, {pipeline_mode = #tpu.pipeline_mode<synchronous>, transform_indices = @transform_4, window_bounds = array<i64: 1, 512>}, {pipeline_mode = #tpu.pipeline_mode<synchronous>, transform_indices = @transform_5, window_bounds = array<i64: 512, 8>}, {pipeline_mode = #tpu.pipeline_mode<synchronous>, transform_indices = @transform_6, window_bounds = array<i64: 1, 8>}, {pipeline_mode = #tpu.pipeline_mode<synchronous>, transform_indices = @transform_7, window_bounds = array<i64: 8, 512>}, {pipeline_mode = #tpu.pipeline_mode<synchronous>, transform_indices = @transform_8, window_bounds = array<i64: 1, 512>}, {pipeline_mode = #tpu.pipeline_mode<synchronous>, transform_indices = @transform_9, window_bounds = array<i64: 512, 256>}, {pipeline_mode = #tpu.pipeline_mode<synchronous>, transform_indices = @transform_10, window_bounds = array<i64: 1, 256>}, {transform_indices = @transform_11, window_bounds = array<i64: 2, 16, 256>}]} {
    %c0 = arith.constant 0 : index
    %c0_0 = arith.constant 0 : index
    %c0_1 = arith.constant 0 : index
    %0 = vector.load %arg1[%c0, %c0_0, %c0_1] : memref<2x16x256xf32, #tpu.memory_space<vmem>>, vector<2x16x256xf32>
    %1 = vector.shape_cast %0 : vector<2x16x256xf32> to vector<32x256xf32>
    %2 = arith.truncf %1 : vector<32x256xf32> to vector<32x256xbf16>
    %c0_2 = arith.constant 0 : index
    %c0_3 = arith.constant 0 : index
    %3 = vector.load %arg2[%c0_2, %c0_3] : memref<256x512xbf16, #tpu.memory_space<vmem>>, vector<256x512xbf16>
    %cst = arith.constant dense<0.000000e+00> : vector<32x512xf32>
    %4 = tpu.matmul %2, %3, %cst {dimension_numbers = #tpu.dot_dimension_numbers<[1], [0], [0], [1], [0, 0, 1, 1], [], []>} : vector<32x256xbf16>, vector<256x512xbf16>, vector<32x512xf32> -> vector<32x512xf32>
    %c0_4 = arith.constant 0 : index
    %c0_5 = arith.constant 0 : index
    %5 = vector.load %arg3[%c0_4, %c0_5] : memref<1x512xf32, #tpu.memory_space<vmem>>, vector<1x512xf32>
    %6 = vector.broadcast %5 : vector<1x512xf32> to vector<32x512xf32>
    %7 = arith.addf %4, %6 : vector<32x512xf32>
    %cst_6 = arith.constant 3.000000e+00 : f32
    %8 = vector.broadcast %cst_6 : f32 to vector<32x512xf32>
    %9 = arith.addf %7, %8 : vector<32x512xf32>
    %cst_7 = arith.constant 0.000000e+00 : f32
    %cst_8 = arith.constant 6.000000e+00 : f32
    %10 = vector.broadcast %cst_7 : f32 to vector<32x512xf32>
    %11 = arith.maximumf %10, %9 : vector<32x512xf32>
    %12 = vector.broadcast %cst_8 : f32 to vector<32x512xf32>
    %13 = arith.minimumf %12, %11 : vector<32x512xf32>
    %14 = arith.mulf %7, %13 : vector<32x512xf32>
    %cst_9 = arith.constant 0.166666672 : f32
    %15 = vector.broadcast %cst_9 : f32 to vector<32x512xf32>
    %16 = arith.mulf %14, %15 : vector<32x512xf32>
    %17 = vector.shape_cast %16 : vector<32x512xf32> to vector<2x16x512xf32>
    %cst_10 = arith.constant 0.000000e+00 : f32
    %18 = vector.broadcast %cst_10 : f32 to vector<2x16x32xf32>
    %19 = vector.extract_strided_slice %17 {offsets = [0, 0, 0], sizes = [2, 16, 480], strides = [1, 1, 1]} : vector<2x16x512xf32> to vector<2x16x480xf32>
    %20 = tpu.concatenate %18, %19 in 2 : vector<2x16x32xf32>, vector<2x16x480xf32> -> vector<2x16x512xf32>
    %21 = vector.extract_strided_slice %17 {offsets = [0, 0, 32], sizes = [2, 16, 480], strides = [1, 1, 1]} : vector<2x16x512xf32> to vector<2x16x480xf32>
    %22 = tpu.concatenate %21, %18 in 2 : vector<2x16x480xf32>, vector<2x16x32xf32> -> vector<2x16x512xf32>
    %c0_11 = arith.constant 0 : index
    %c0_12 = arith.constant 0 : index
    %23 = vector.load %arg4[%c0_11, %c0_12] : memref<9x512xf32, #tpu.memory_space<vmem>>, vector<9x512xf32>
    %cst_13 = arith.constant 0.000000e+00 : f32
    %24 = vector.broadcast %cst_13 : f32 to vector<2x1x512xf32>
    %25 = vector.extract_strided_slice %23 {offsets = [3, 0], sizes = [1, 512], strides = [1, 1]} : vector<9x512xf32> to vector<1x512xf32>
    %26 = vector.shape_cast %25 : vector<1x512xf32> to vector<1x1x512xf32>
    %27 = vector.broadcast %26 : vector<1x1x512xf32> to vector<2x16x512xf32>
    %28 = arith.mulf %20, %27 : vector<2x16x512xf32>
    %29 = vector.extract_strided_slice %23 {offsets = [4, 0], sizes = [1, 512], strides = [1, 1]} : vector<9x512xf32> to vector<1x512xf32>
    %30 = vector.shape_cast %29 : vector<1x512xf32> to vector<1x1x512xf32>
    %31 = vector.broadcast %30 : vector<1x1x512xf32> to vector<2x16x512xf32>
    %32 = arith.mulf %17, %31 : vector<2x16x512xf32>
    %33 = arith.addf %28, %32 : vector<2x16x512xf32>
    %34 = vector.extract_strided_slice %23 {offsets = [5, 0], sizes = [1, 512], strides = [1, 1]} : vector<9x512xf32> to vector<1x512xf32>
    %35 = vector.shape_cast %34 : vector<1x512xf32> to vector<1x1x512xf32>
    %36 = vector.broadcast %35 : vector<1x1x512xf32> to vector<2x16x512xf32>
    %37 = arith.mulf %22, %36 : vector<2x16x512xf32>
    %38 = arith.addf %33, %37 : vector<2x16x512xf32>
    %c0_14 = arith.constant 0 : index
    %c0_15 = arith.constant 0 : index
    %39 = vector.load %arg5[%c0_14, %c0_15] : memref<1x512xf32, #tpu.memory_space<vmem>>, vector<1x512xf32>
    %40 = vector.shape_cast %39 : vector<1x512xf32> to vector<1x1x512xf32>
    %41 = vector.broadcast %40 : vector<1x1x512xf32> to vector<2x16x512xf32>
    %42 = arith.addf %38, %41 : vector<2x16x512xf32>
    %43 = vector.extract_strided_slice %23 {offsets = [0, 0], sizes = [1, 512], strides = [1, 1]} : vector<9x512xf32> to vector<1x512xf32>
    %44 = vector.shape_cast %43 : vector<1x512xf32> to vector<1x1x512xf32>
    %45 = vector.broadcast %44 : vector<1x1x512xf32> to vector<2x16x512xf32>
    %46 = arith.mulf %20, %45 : vector<2x16x512xf32>
    %47 = vector.extract_strided_slice %23 {offsets = [1, 0], sizes = [1, 512], strides = [1, 1]} : vector<9x512xf32> to vector<1x512xf32>
    %48 = vector.shape_cast %47 : vector<1x512xf32> to vector<1x1x512xf32>
    %49 = vector.broadcast %48 : vector<1x1x512xf32> to vector<2x16x512xf32>
    %50 = arith.mulf %17, %49 : vector<2x16x512xf32>
    %51 = arith.addf %46, %50 : vector<2x16x512xf32>
    %52 = vector.extract_strided_slice %23 {offsets = [2, 0], sizes = [1, 512], strides = [1, 1]} : vector<9x512xf32> to vector<1x512xf32>
    %53 = vector.shape_cast %52 : vector<1x512xf32> to vector<1x1x512xf32>
    %54 = vector.broadcast %53 : vector<1x1x512xf32> to vector<2x16x512xf32>
    %55 = arith.mulf %22, %54 : vector<2x16x512xf32>
    %56 = arith.addf %51, %55 : vector<2x16x512xf32>
    %57 = vector.extract_strided_slice %56 {offsets = [0, 0, 0], sizes = [2, 15, 512], strides = [1, 1, 1]} : vector<2x16x512xf32> to vector<2x15x512xf32>
    %58 = tpu.concatenate %24, %57 in 1 : vector<2x1x512xf32>, vector<2x15x512xf32> -> vector<2x16x512xf32>
    %59 = arith.addf %42, %58 : vector<2x16x512xf32>
    %60 = vector.extract_strided_slice %23 {offsets = [6, 0], sizes = [1, 512], strides = [1, 1]} : vector<9x512xf32> to vector<1x512xf32>
    %61 = vector.shape_cast %60 : vector<1x512xf32> to vector<1x1x512xf32>
    %62 = vector.broadcast %61 : vector<1x1x512xf32> to vector<2x16x512xf32>
    %63 = arith.mulf %20, %62 : vector<2x16x512xf32>
    %64 = vector.extract_strided_slice %23 {offsets = [7, 0], sizes = [1, 512], strides = [1, 1]} : vector<9x512xf32> to vector<1x512xf32>
    %65 = vector.shape_cast %64 : vector<1x512xf32> to vector<1x1x512xf32>
    %66 = vector.broadcast %65 : vector<1x1x512xf32> to vector<2x16x512xf32>
    %67 = arith.mulf %17, %66 : vector<2x16x512xf32>
    %68 = arith.addf %63, %67 : vector<2x16x512xf32>
    %69 = vector.extract_strided_slice %23 {offsets = [8, 0], sizes = [1, 512], strides = [1, 1]} : vector<9x512xf32> to vector<1x512xf32>
    %70 = vector.shape_cast %69 : vector<1x512xf32> to vector<1x1x512xf32>
    %71 = vector.broadcast %70 : vector<1x1x512xf32> to vector<2x16x512xf32>
    %72 = arith.mulf %22, %71 : vector<2x16x512xf32>
    %73 = arith.addf %68, %72 : vector<2x16x512xf32>
    %74 = vector.extract_strided_slice %73 {offsets = [0, 1, 0], sizes = [2, 15, 512], strides = [1, 1, 1]} : vector<2x16x512xf32> to vector<2x15x512xf32>
    %75 = tpu.concatenate %74, %24 in 1 : vector<2x15x512xf32>, vector<2x1x512xf32> -> vector<2x16x512xf32>
    %76 = arith.addf %59, %75 : vector<2x16x512xf32>
    %cst_16 = arith.constant 3.000000e+00 : f32
    %77 = vector.broadcast %cst_16 : f32 to vector<2x16x512xf32>
    %78 = arith.addf %76, %77 : vector<2x16x512xf32>
    %cst_17 = arith.constant 0.000000e+00 : f32
    %cst_18 = arith.constant 6.000000e+00 : f32
    %79 = vector.broadcast %cst_17 : f32 to vector<2x16x512xf32>
    %80 = arith.maximumf %79, %78 : vector<2x16x512xf32>
    %81 = vector.broadcast %cst_18 : f32 to vector<2x16x512xf32>
    %82 = arith.minimumf %81, %80 : vector<2x16x512xf32>
    %83 = arith.mulf %76, %82 : vector<2x16x512xf32>
    %cst_19 = arith.constant 0.166666672 : f32
    %84 = vector.broadcast %cst_19 : f32 to vector<2x16x512xf32>
    %85 = arith.mulf %83, %84 : vector<2x16x512xf32>
    %cst_20 = arith.constant dense<0.000000e+00> : vector<2x512xf32>
    %86 = vector.multi_reduction <add>, %85, %cst_20 [1] : vector<2x16x512xf32> to vector<2x512xf32>
    %c0_21 = arith.constant 0 : index
    %c0_22 = arith.constant 0 : index
    %87 = vector.load %arg6[%c0_21, %c0_22] : memref<512x8xf32, #tpu.memory_space<vmem>>, vector<512x8xf32>
    %cst_23 = arith.constant dense<0.000000e+00> : vector<2x8xf32>
    %88 = tpu.matmul %86, %87, %cst_23 {dimension_numbers = #tpu.dot_dimension_numbers<[1], [0], [0], [1], [0, 0, 1, 1], [], []>} : vector<2x512xf32>, vector<512x8xf32>, vector<2x8xf32> -> vector<2x8xf32>
    %c0_24 = arith.constant 0 : index
    %c0_25 = arith.constant 0 : index
    %89 = vector.load %arg7[%c0_24, %c0_25] : memref<1x8xf32, #tpu.memory_space<vmem>>, vector<1x8xf32>
    %90 = vector.broadcast %89 : vector<1x8xf32> to vector<2x8xf32>
    %91 = arith.addf %88, %90 : vector<2x8xf32>
    %cst_26 = arith.constant 0.000000e+00 : f32
    %92 = vector.broadcast %cst_26 : f32 to vector<2x8xf32>
    %93 = arith.maximumf %91, %92 : vector<2x8xf32>
    %c0_27 = arith.constant 0 : index
    %c0_28 = arith.constant 0 : index
    %94 = vector.load %arg8[%c0_27, %c0_28] : memref<8x512xf32, #tpu.memory_space<vmem>>, vector<8x512xf32>
    %cst_29 = arith.constant dense<0.000000e+00> : vector<2x512xf32>
    %95 = tpu.matmul %93, %94, %cst_29 {dimension_numbers = #tpu.dot_dimension_numbers<[1], [0], [0], [1], [0, 0, 1, 1], [], []>} : vector<2x8xf32>, vector<8x512xf32>, vector<2x512xf32> -> vector<2x512xf32>
    %c0_30 = arith.constant 0 : index
    %c0_31 = arith.constant 0 : index
    %96 = vector.load %arg9[%c0_30, %c0_31] : memref<1x512xf32, #tpu.memory_space<vmem>>, vector<1x512xf32>
    %97 = vector.broadcast %96 : vector<1x512xf32> to vector<2x512xf32>
    %98 = arith.addf %95, %97 : vector<2x512xf32>
    %cst_32 = arith.constant 3.000000e+00 : f32
    %99 = vector.broadcast %cst_32 : f32 to vector<2x512xf32>
    %100 = arith.addf %98, %99 : vector<2x512xf32>
    %cst_33 = arith.constant 0.000000e+00 : f32
    %cst_34 = arith.constant 6.000000e+00 : f32
    %101 = vector.broadcast %cst_33 : f32 to vector<2x512xf32>
    %102 = arith.maximumf %101, %100 : vector<2x512xf32>
    %103 = vector.broadcast %cst_34 : f32 to vector<2x512xf32>
    %104 = arith.minimumf %103, %102 : vector<2x512xf32>
    %cst_35 = arith.constant 0.166666672 : f32
    %105 = vector.broadcast %cst_35 : f32 to vector<2x512xf32>
    %106 = arith.mulf %104, %105 : vector<2x512xf32>
    %107 = vector.shape_cast %106 : vector<2x512xf32> to vector<2x1x512xf32>
    %108 = vector.broadcast %107 : vector<2x1x512xf32> to vector<2x16x512xf32>
    %109 = arith.mulf %85, %108 : vector<2x16x512xf32>
    %110 = vector.shape_cast %109 : vector<2x16x512xf32> to vector<32x512xf32>
    %111 = arith.truncf %110 : vector<32x512xf32> to vector<32x512xbf16>
    %c0_36 = arith.constant 0 : index
    %c0_37 = arith.constant 0 : index
    %112 = vector.load %arg10[%c0_36, %c0_37] : memref<512x256xbf16, #tpu.memory_space<vmem>>, vector<512x256xbf16>
    %cst_38 = arith.constant dense<0.000000e+00> : vector<32x256xf32>
    %113 = tpu.matmul %111, %112, %cst_38 {dimension_numbers = #tpu.dot_dimension_numbers<[1], [0], [0], [1], [0, 0, 1, 1], [], []>} : vector<32x512xbf16>, vector<512x256xbf16>, vector<32x256xf32> -> vector<32x256xf32>
    %c0_39 = arith.constant 0 : index
    %c0_40 = arith.constant 0 : index
    %114 = vector.load %arg11[%c0_39, %c0_40] : memref<1x256xf32, #tpu.memory_space<vmem>>, vector<1x256xf32>
    %115 = vector.broadcast %114 : vector<1x256xf32> to vector<32x256xf32>
    %116 = arith.addf %113, %115 : vector<32x256xf32>
    %117 = arith.addf %116, %1 : vector<32x256xf32>
    %118 = vector.shape_cast %117 : vector<32x256xf32> to vector<2x16x256xf32>
    %c0_41 = arith.constant 0 : index
    %c0_42 = arith.constant 0 : index
    %c0_43 = arith.constant 0 : index
    %119 = vector.load %arg12[%c0_41, %c0_42, %c0_43] : memref<2x16x256xf32, #tpu.memory_space<vmem>>, vector<2x16x256xf32>
    tpu.vector_store %arg12[%c0_41, %c0_42, %c0_43], %118 {strides = array<i32>} : memref<2x16x256xf32, #tpu.memory_space<vmem>>, vector<2x16x256xf32>,
    return
  }
  func.func @transform_0(%arg0: i32) -> (i32, i32, i32) {
    %c0_i32 = arith.constant 0 : i32
    %c0_i32_0 = arith.constant 0 : i32
    %c0_i32_1 = arith.constant 0 : i32
    return %arg0, %c0_i32, %c0_i32_0 : i32, i32, i32
  }
  func.func @transform_1(%arg0: i32) -> (i32, i32) {
    %c0_i32 = arith.constant 0 : i32
    %c0_i32_0 = arith.constant 0 : i32
    %c0_i32_1 = arith.constant 0 : i32
    return %c0_i32, %c0_i32_0 : i32, i32
  }
  func.func @transform_2(%arg0: i32) -> (i32, i32) {
    %c0_i32 = arith.constant 0 : i32
    %c0_i32_0 = arith.constant 0 : i32
    %c0_i32_1 = arith.constant 0 : i32
    return %c0_i32, %c0_i32_0 : i32, i32
  }
  func.func @transform_3(%arg0: i32) -> (i32, i32) {
    %c0_i32 = arith.constant 0 : i32
    %c0_i32_0 = arith.constant 0 : i32
    %c0_i32_1 = arith.constant 0 : i32
    return %c0_i32, %c0_i32_0 : i32, i32
  }
  func.func @transform_4(%arg0: i32) -> (i32, i32) {
    %c0_i32 = arith.constant 0 : i32
    %c0_i32_0 = arith.constant 0 : i32
    %c0_i32_1 = arith.constant 0 : i32
    return %c0_i32, %c0_i32_0 : i32, i32
  }
  func.func @transform_5(%arg0: i32) -> (i32, i32) {
    %c0_i32 = arith.constant 0 : i32
    %c0_i32_0 = arith.constant 0 : i32
    %c0_i32_1 = arith.constant 0 : i32
    return %c0_i32, %c0_i32_0 : i32, i32
  }
  func.func @transform_6(%arg0: i32) -> (i32, i32) {
    %c0_i32 = arith.constant 0 : i32
    %c0_i32_0 = arith.constant 0 : i32
    %c0_i32_1 = arith.constant 0 : i32
    return %c0_i32, %c0_i32_0 : i32, i32
  }
  func.func @transform_7(%arg0: i32) -> (i32, i32) {
    %c0_i32 = arith.constant 0 : i32
    %c0_i32_0 = arith.constant 0 : i32
    %c0_i32_1 = arith.constant 0 : i32
    return %c0_i32, %c0_i32_0 : i32, i32
  }
  func.func @transform_8(%arg0: i32) -> (i32, i32) {
    %c0_i32 = arith.constant 0 : i32
    %c0_i32_0 = arith.constant 0 : i32
    %c0_i32_1 = arith.constant 0 : i32
    return %c0_i32, %c0_i32_0 : i32, i32
  }
  func.func @transform_9(%arg0: i32) -> (i32, i32) {
    %c0_i32 = arith.constant 0 : i32
    %c0_i32_0 = arith.constant 0 : i32
    %c0_i32_1 = arith.constant 0 : i32
    return %c0_i32, %c0_i32_0 : i32, i32
  }
  func.func @transform_10(%arg0: i32) -> (i32, i32) {
    %c0_i32 = arith.constant 0 : i32
    %c0_i32_0 = arith.constant 0 : i32
    %c0_i32_1 = arith.constant 0 : i32
    return %c0_i32, %c0_i32_0 : i32, i32
  }
  func.func @transform_11(%arg0: i32) -> (i32, i32, i32) {
    %c0_i32 = arith.constant 0 : i32
    %c0_i32_0 = arith.constant 0 : i32
    %c0_i32_1 = arith.constant 0 : i32
    return %arg0, %c0_i32, %c0_i32_0 : i32, i32, i32
  }
}

</mosaic_0001>

<llo_original>
// kernel: tpu_custom_call.1
$region0: #{tpu_custom_call.1}
  #allocation0 [shape = 'u32[]', space=smem, size = 0x4, offset = 0x4, fixed_abs, tag = 'smem constant byte address 0x4 - core index']
  #allocation1 [shape = 'u32[144,128]{1,0:T(1,128)}', space=vmem, size = 0x12000, scoped, tag = 'internal scratch']
  %s0 = inlined_call_operand.hbm [shape: f32[2,16,256], index: 0, kind: input, shape index: {}]
  %s1 = inlined_call_operand.vmem [shape: bf16[256,512], index: 1, kind: input, shape index: {}]
  %s2 = inlined_call_operand.hbm [shape: f32[1,512], index: 2, kind: input, shape index: {}]
  %s3 = inlined_call_operand.hbm [shape: f32[9,512], index: 3, kind: input, shape index: {}]
  %s4 = inlined_call_operand.vmem [shape: f32[1,512], index: 4, kind: input, shape index: {}]
  %s5 = inlined_call_operand.vmem [shape: f32[512,8], index: 5, kind: input, shape index: {}]
  %s6 = inlined_call_operand.vmem [shape: f32[1,8], index: 6, kind: input, shape index: {}]
  %s7 = inlined_call_operand.vmem [shape: f32[8,512], index: 7, kind: input, shape index: {}]
  %s8 = inlined_call_operand.vmem [shape: f32[1,512], index: 8, kind: input, shape index: {}]
  %s9 = inlined_call_operand.hbm [shape: bf16[512,256], index: 9, kind: input, shape index: {}]
  %s10 = inlined_call_operand.vmem [shape: f32[1,256], index: 10, kind: input, shape index: {}]
  %s11 = inlined_call_operand.hbm [shape: f32[2,16,256], index: 11, kind: output, shape index: {}]
  %s12 = sld [smem:[#allocation0]]
  $region70: #{tpu_custom_call.1} parent=0
    _
  %s14 = ssub.s32 1, %s12
  %s15 = scalar_select 0, %s14, %s12
  $region1: #{tpu_custom_call.1} parent=0
    #allocation2 [shape = 'u8[32768]{0}', space=vmem, size = 0x8000, scoped, tag = 'input window, operand 0, single buffered']
    #allocation3 [shape = 's32[1]{0}', space=sflag, size = 0x4, scoped, tag = 'scoped memory for tpu_custom_call.1']
    #allocation4 [shape = 's32[1]{0}', space=sflag, size = 0x4, scoped, tag = 'scoped memory for tpu_custom_call.1']
    #allocation5 [shape = 'u8[2048]{0}', space=vmem, size = 0x800, scoped, tag = 'input window, operand 2, single buffered']
    #allocation6 [shape = 's32[1]{0}', space=sflag, size = 0x4, scoped, tag = 'scoped memory for tpu_custom_call.1']
    #allocation7 [shape = 'u8[32768]{0}', space=vmem, size = 0x8000, scoped, tag = 'input window, operand 3, single buffered']
    #allocation8 [shape = 'u8[262144]{0}', space=vmem, size = 0x40000, scoped, tag = 'input window, operand 9, single buffered']
    #allocation9 [shape = 's32[1]{0}', space=sflag, size = 0x4, scoped, tag = 'scoped memory for tpu_custom_call.1']
    #allocation10 [shape = 'u8[32768]{0}', space=vmem, size = 0x8000, scoped, tag = 'output window, operand 0, single buffered']
    %16 = vsyncpa [#allocation3], 0
    %17 = vsyncpa [#allocation6], 0
    %18 = vsyncpa [#allocation9], 0
    %19 = vsyncpa [#allocation4], 0
    // Predicated region
    $region2: #{tpu_custom_call.1} parent=1 // pred_check
      _
    $region3: #{tpu_custom_call.1} parent=1 // pred_check_branch
      %21 = sbr.rel (0) target = $region5
    $region4: #{tpu_custom_call.1} parent=1 // pred_region
      %s23 = ssub.s32 1024, 1024
      %24 = vsyncadd [#allocation3], %s23
      %s25 = sshll.u32 [#allocation2], 4
      %s26 = int_to_ptr.vmem [resolvable:$true] %s25
      %31 = dma.hbm_to_vmem [thread:$0]  %s0, 1024, %s26, [#allocation3], 256, 256, 16
    $region5: #{tpu_custom_call.1} parent=1 // pred_fallthru
      _
    // Predicated region
    $region6: #{tpu_custom_call.1} parent=1 // pred_check
      _
    $region7: #{tpu_custom_call.1} parent=1 // pred_check_branch
      %33 = sbr.rel (0) target = $region9
    $region8: #{tpu_custom_call.1} parent=1 // pred_region
      _
    $region9: #{tpu_custom_call.1} parent=1 // pred_fallthru
      _
    // Predicated region
    $region10: #{tpu_custom_call.1} parent=1 // pred_check
      _
    $region11: #{tpu_custom_call.1} parent=1 // pred_check_branch
      %35 = sbr.rel (0) target = $region13
    $region12: #{tpu_custom_call.1} parent=1 // pred_region
      %s37 = ssub.s32 64, 64
      %38 = vsyncadd [#allocation6], %s37
      %s40 = sshll.u32 [#allocation5], 4
      %s41 = int_to_ptr.vmem [resolvable:$true] %s40
      %43 = dma.hbm_to_vmem [thread:$0]  %s2, 64, %s41, [#allocation6]
    $region13: #{tpu_custom_call.1} parent=1 // pred_fallthru
      _
    // Predicated region
    $region14: #{tpu_custom_call.1} parent=1 // pred_check
      _
    $region15: #{tpu_custom_call.1} parent=1 // pred_check_branch
      %45 = sbr.rel (0) target = $region17
    $region16: #{tpu_custom_call.1} parent=1 // pred_region
      %s47 = ssub.s32 1024, 1024
      %48 = vsyncadd [#allocation6], %s47
      %s49 = sshll.u32 [#allocation7], 4
      %s50 = int_to_ptr.vmem [resolvable:$true] %s49
      %55 = dma.hbm_to_vmem [thread:$0]  %s3, 1024, %s50, [#allocation6], 512, 512, 32
    $region17: #{tpu_custom_call.1} parent=1 // pred_fallthru
      _
    // Predicated region
    $region18: #{tpu_custom_call.1} parent=1 // pred_check
      _
    $region19: #{tpu_custom_call.1} parent=1 // pred_check_branch
      %57 = sbr.rel (0) target = $region21
    $region20: #{tpu_custom_call.1} parent=1 // pred_region
      _
    $region21: #{tpu_custom_call.1} parent=1 // pred_fallthru
      _
    // Predicated region
    $region22: #{tpu_custom_call.1} parent=1 // pred_check
      _
    $region23: #{tpu_custom_call.1} parent=1 // pred_check_branch
      %59 = sbr.rel (0) target = $region25
    $region24: #{tpu_custom_call.1} parent=1 // pred_region
      _
    $region25: #{tpu_custom_call.1} parent=1 // pred_fallthru
      _
    // Predicated region
    $region26: #{tpu_custom_call.1} parent=1 // pred_check
      _
    $region27: #{tpu_custom_call.1} parent=1 // pred_check_branch
      %61 = sbr.rel (0) target = $region29
    $region28: #{tpu_custom_call.1} parent=1 // pred_region
      _
    $region29: #{tpu_custom_call.1} parent=1 // pred_fallthru
      _
    // Predicated region
    $region30: #{tpu_custom_call.1} parent=1 // pred_check
      _
    $region31: #{tpu_custom_call.1} parent=1 // pred_check_branch
      %63 = sbr.rel (0) target = $region33
    $region32: #{tpu_custom_call.1} parent=1 // pred_region
      _
    $region33: #{tpu_custom_call.1} parent=1 // pred_fallthru
      _
    // Predicated region
    $region34: #{tpu_custom_call.1} parent=1 // pred_check
      _
    $region35: #{tpu_custom_call.1} parent=1 // pred_check_branch
      %65 = sbr.rel (0) target = $region37
    $region36: #{tpu_custom_call.1} parent=1 // pred_region
      _
    $region37: #{tpu_custom_call.1} parent=1 // pred_fallthru
      _
    // Predicated region
    $region38: #{tpu_custom_call.1} parent=1 // pred_check
      _
    $region39: #{tpu_custom_call.1} parent=1 // pred_check_branch
      %67 = sbr.rel (0) target = $region41
    $region40: #{tpu_custom_call.1} parent=1 // pred_region
      %s69 = ssub.s32 8192, 8192
      %70 = vsyncadd [#allocation9], %s69
      %s71 = sshll.u32 [#allocation8], 4
      %s72 = int_to_ptr.vmem [resolvable:$true] %s71
      %77 = dma.hbm_to_vmem [thread:$0]  %s9, 8192, %s72, [#allocation9], 128, 128, 8
    $region41: #{tpu_custom_call.1} parent=1 // pred_fallthru
      _
    // Predicated region
    $region42: #{tpu_custom_call.1} parent=1 // pred_check
      _
    $region43: #{tpu_custom_call.1} parent=1 // pred_check_branch
      %79 = sbr.rel (0) target = $region45
    $region44: #{tpu_custom_call.1} parent=1 // pred_region
      _
    $region45: #{tpu_custom_call.1} parent=1 // pred_fallthru
      _
    // Predicated region
    $region46: #{tpu_custom_call.1} parent=1 // pred_check
      _
    $region47: #{tpu_custom_call.1} parent=1 // pred_check_branch
      %81 = sbr.rel (0) target = $region49
    $region48: #{tpu_custom_call.1} parent=1 // pred_region
      %82 = dma.done [#allocation3], 1024
    $region49: #{tpu_custom_call.1} parent=1 // pred_fallthru
      _
    // Predicated region
    $region50: #{tpu_custom_call.1} parent=1 // pred_check
      _
    $region51: #{tpu_custom_call.1} parent=1 // pred_check_branch
      %84 = sbr.rel (0) target = $region53
    $region52: #{tpu_custom_call.1} parent=1 // pred_region
      %85 = dma.done [#allocation6], 64
    $region53: #{tpu_custom_call.1} parent=1 // pred_fallthru
      _
    // Predicated region
    $region54: #{tpu_custom_call.1} parent=1 // pred_check
      _
    $region55: #{tpu_custom_call.1} parent=1 // pred_check_branch
      %87 = sbr.rel (0) target = $region57
    $region56: #{tpu_custom_call.1} parent=1 // pred_region
      %88 = dma.done [#allocation6], 1024
    $region57: #{tpu_custom_call.1} parent=1 // pred_fallthru
      _
    // Predicated region
    $region58: #{tpu_custom_call.1} parent=1 // pred_check
      _
    $region59: #{tpu_custom_call.1} parent=1 // pred_check_branch
      %90 = sbr.rel (0) target = $region61
    $region60: #{tpu_custom_call.1} parent=1 // pred_region
      %91 = dma.done [#allocation9], 8192
    $region61: #{tpu_custom_call.1} parent=1 // pred_fallthru
      _
    %v92 = vld [vmem:[#allocation2] sm:$0xff]
    %v93 = vld [vmem:[#allocation2 + $0x8] sm:$0xff]
    %v94 = vld [vmem:[#allocation2 + $0x10] sm:$0xff]
    %v95 = vld [vmem:[#allocation2 + $0x18] sm:$0xff]
    %v96 = vld [vmem:[#allocation2 + $0x20] sm:$0xff]
    %v97 = vld [vmem:[#allocation2 + $0x28] sm:$0xff]
    %v98 = vld [vmem:[#allocation2 + $0x30] sm:$0xff]
    %v99 = vld [vmem:[#allocation2 + $0x38] sm:$0xff]
    %v100 = vpack.c.bf16 %v94, %v92
    %v101 = vpack.c.bf16 %v95, %v93
    %v102 = vpack.c.bf16 %v98, %v96
    %v103 = vpack.c.bf16 %v99, %v97
    %v104 = vld [vmem:[%s1] sm:$0xff]
    %v105 = vld [vmem:[%s1 + $0x8] sm:$0xff]
    %v106 = vld [vmem:[%s1 + $0x10] sm:$0xff]
    %v107 = vld [vmem:[%s1 + $0x18] sm:$0xff]
    %v108 = vld [vmem:[%s1 + $0x20] sm:$0xff]
    %v109 = vld [vmem:[%s1 + $0x28] sm:$0xff]
    %v110 = vld [vmem:[%s1 + $0x30] sm:$0xff]
    %v111 = vld [vmem:[%s1 + $0x38] sm:$0xff]
    %v112 = vld [vmem:[%s1 + $0x40] sm:$0xff]
    %v113 = vld [vmem:[%s1 + $0x48] sm:$0xff]
    %v114 = vld [vmem:[%s1 + $0x50] sm:$0xff]
    %v115 = vld [vmem:[%s1 + $0x58] sm:$0xff]
    %v116 = vld [vmem:[%s1 + $0x60] sm:$0xff]
    %v117 = vld [vmem:[%s1 + $0x68] sm:$0xff]
    %v118 = vld [vmem:[%s1 + $0x70] sm:$0xff]
    %v119 = vld [vmem:[%s1 + $0x78] sm:$0xff]
    %v120 = vld [vmem:[%s1 + $0x80] sm:$0xff]
    %v121 = vld [vmem:[%s1 + $0x88] sm:$0xff]
    %v122 = vld [vmem:[%s1 + $0x90] sm:$0xff]
    %v123 = vld [vmem:[%s1 + $0x98] sm:$0xff]
    %v124 = vld [vmem:[%s1 + $0xa0] sm:$0xff]
    %v125 = vld [vmem:[%s1 + $0xa8] sm:$0xff]
    %v126 = vld [vmem:[%s1 + $0xb0] sm:$0xff]
    %v127 = vld [vmem:[%s1 + $0xb8] sm:$0xff]
    %v128 = vld [vmem:[%s1 + $0xc0] sm:$0xff]
    %v129 = vld [vmem:[%s1 + $0xc8] sm:$0xff]
    %v130 = vld [vmem:[%s1 + $0xd0] sm:$0xff]
    %v131 = vld [vmem:[%s1 + $0xd8] sm:$0xff]
    %v132 = vld [vmem:[%s1 + $0xe0] sm:$0xff]
    %v133 = vld [vmem:[%s1 + $0xe8] sm:$0xff]
    %v134 = vld [vmem:[%s1 + $0xf0] sm:$0xff]
    %v135 = vld [vmem:[%s1 + $0xf8] sm:$0xff]
    %v136 = vld [vmem:[%s1 + $0x100] sm:$0xff]
    %v137 = vld [vmem:[%s1 + $0x108] sm:$0xff]
    %v138 = vld [vmem:[%s1 + $0x110] sm:$0xff]
    %v139 = vld [vmem:[%s1 + $0x118] sm:$0xff]
    %v140 = vld [vmem:[%s1 + $0x120] sm:$0xff]
    %v141 = vld [vmem:[%s1 + $0x128] sm:$0xff]
    %v142 = vld [vmem:[%s1 + $0x130] sm:$0xff]
    %v143 = vld [vmem:[%s1 + $0x138] sm:$0xff]
    %v144 = vld [vmem:[%s1 + $0x140] sm:$0xff]
    %v145 = vld [vmem:[%s1 + $0x148] sm:$0xff]
    %v146 = vld [vmem:[%s1 + $0x150] sm:$0xff]
    %v147 = vld [vmem:[%s1 + $0x158] sm:$0xff]
    %v148 = vld [vmem:[%s1 + $0x160] sm:$0xff]
    %v149 = vld [vmem:[%s1 + $0x168] sm:$0xff]
    %v150 = vld [vmem:[%s1 + $0x170] sm:$0xff]
    %v151 = vld [vmem:[%s1 + $0x178] sm:$0xff]
    %v152 = vld [vmem:[%s1 + $0x180] sm:$0xff]
    %v153 = vld [vmem:[%s1 + $0x188] sm:$0xff]
    %v154 = vld [vmem:[%s1 + $0x190] sm:$0xff]
    %v155 = vld [vmem:[%s1 + $0x198] sm:$0xff]
    %v156 = vld [vmem:[%s1 + $0x1a0] sm:$0xff]
    %v157 = vld [vmem:[%s1 + $0x1a8] sm:$0xff]
    %v158 = vld [vmem:[%s1 + $0x1b0] sm:$0xff]
    %v159 = vld [vmem:[%s1 + $0x1b8] sm:$0xff]
    %v160 = vld [vmem:[%s1 + $0x1c0] sm:$0xff]
    %v161 = vld [vmem:[%s1 + $0x1c8] sm:$0xff]
    %v162 = vld [vmem:[%s1 + $0x1d0] sm:$0xff]
    %v163 = vld [vmem:[%s1 + $0x1d8] sm:$0xff]
    %v164 = vld [vmem:[%s1 + $0x1e0] sm:$0xff]
    %v165 = vld [vmem:[%s1 + $0x1e8] sm:$0xff]
    %v166 = vld [vmem:[%s1 + $0x1f0] sm:$0xff]
    %v167 = vld [vmem:[%s1 + $0x1f8] sm:$0xff]
    %v168 = vld [vmem:[#allocation5] sm:$0xf]
    %v170 = vlaneseq
    %v171 = vshrl.u32 %v170, 7
    %v172 = vsub.s32 0, %v171
    %v173 = vrot.slane %v168, %v172
    %v174 = vlaneseq
    %v175 = vshrl.u32 %v174, 7
    %v176 = vsub.s32 1, %v175
    %v177 = vrot.slane %v168, %v176
    %v178 = vlaneseq
    %v179 = vshrl.u32 %v178, 7
    %v180 = vsub.s32 2, %v179
    %v181 = vrot.slane %v168, %v180
    %v182 = vlaneseq
    %v183 = vshrl.u32 %v182, 7
    %v184 = vsub.s32 3, %v183
    %v185 = vrot.slane %v168, %v184
    %v254 = vunpack.c.l.b16 %v104
    %v255 = vunpack.c.h.b16 %v104
    %v256 = vunpack.c.l.b16 %v105
    %v257 = vunpack.c.h.b16 %v105
    %v258 = vunpack.c.l.b16 %v106
    %v259 = vunpack.c.h.b16 %v106
    %v260 = vunpack.c.l.b16 %v107
    %v261 = vunpack.c.h.b16 %v107
    %v262 = vunpack.c.l.b16 %v108
    %v263 = vunpack.c.h.b16 %v108
    %v264 = vunpack.c.l.b16 %v109
    %v265 = vunpack.c.h.b16 %v109
    %v266 = vunpack.c.l.b16 %v110
    %v267 = vunpack.c.h.b16 %v110
    %v268 = vunpack.c.l.b16 %v111
    %v269 = vunpack.c.h.b16 %v111
    %v270 = vunpack.c.l.b16 %v112
    %v271 = vunpack.c.h.b16 %v112
    %v272 = vunpack.c.l.b16 %v113
    %v273 = vunpack.c.h.b16 %v113
    %v274 = vunpack.c.l.b16 %v114
    %v275 = vunpack.c.h.b16 %v114
    %v276 = vunpack.c.l.b16 %v115
    %v277 = vunpack.c.h.b16 %v115
    %v278 = vunpack.c.l.b16 %v116
    %v279 = vunpack.c.h.b16 %v116
    %v280 = vunpack.c.l.b16 %v117
    %v281 = vunpack.c.h.b16 %v117
    %v282 = vunpack.c.l.b16 %v118
    %v283 = vunpack.c.h.b16 %v118
    %v284 = vunpack.c.l.b16 %v119
    %v285 = vunpack.c.h.b16 %v119
    %v286 = vunpack.c.l.b16 %v120
    %v287 = vunpack.c.h.b16 %v120
    %v288 = vunpack.c.l.b16 %v121
    %v289 = vunpack.c.h.b16 %v121
    %v290 = vunpack.c.l.b16 %v122
    %v291 = vunpack.c.h.b16 %v122
    %v292 = vunpack.c.l.b16 %v123
    %v293 = vunpack.c.h.b16 %v123
    %v294 = vunpack.c.l.b16 %v124
    %v295 = vunpack.c.h.b16 %v124
    %v296 = vunpack.c.l.b16 %v125
    %v297 = vunpack.c.h.b16 %v125
    %v298 = vunpack.c.l.b16 %v126
    %v299 = vunpack.c.h.b16 %v126
    %v300 = vunpack.c.l.b16 %v127
    %v301 = vunpack.c.h.b16 %v127
    %v302 = vunpack.c.l.b16 %v128
    %v303 = vunpack.c.h.b16 %v128
    %v304 = vunpack.c.l.b16 %v129
    %v305 = vunpack.c.h.b16 %v129
    %v306 = vunpack.c.l.b16 %v130
    %v307 = vunpack.c.h.b16 %v130
    %v308 = vunpack.c.l.b16 %v131
    %v309 = vunpack.c.h.b16 %v131
    %v310 = vunpack.c.l.b16 %v132
    %v311 = vunpack.c.h.b16 %v132
    %v312 = vunpack.c.l.b16 %v133
    %v313 = vunpack.c.h.b16 %v133
    %v314 = vunpack.c.l.b16 %v134
    %v315 = vunpack.c.h.b16 %v134
    %v316 = vunpack.c.l.b16 %v135
    %v317 = vunpack.c.h.b16 %v135
    %v318 = vunpack.c.l.b16 %v136
    %v319 = vunpack.c.h.b16 %v136
    %v320 = vunpack.c.l.b16 %v137
    %v321 = vunpack.c.h.b16 %v137
    %v322 = vunpack.c.l.b16 %v138
    %v323 = vunpack.c.h.b16 %v138
    %v324 = vunpack.c.l.b16 %v139
    %v325 = vunpack.c.h.b16 %v139
    %v326 = vunpack.c.l.b16 %v140
    %v327 = vunpack.c.h.b16 %v140
    %v328 = vunpack.c.l.b16 %v141
    %v329 = vunpack.c.h.b16 %v141
    %v330 = vunpack.c.l.b16 %v142
    %v331 = vunpack.c.h.b16 %v142
    %v332 = vunpack.c.l.b16 %v143
    %v333 = vunpack.c.h.b16 %v143
    %v334 = vunpack.c.l.b16 %v144
    %v335 = vunpack.c.h.b16 %v144
    %v336 = vunpack.c.l.b16 %v145
    %v337 = vunpack.c.h.b16 %v145
    %v338 = vunpack.c.l.b16 %v146
    %v339 = vunpack.c.h.b16 %v146
    %v340 = vunpack.c.l.b16 %v147
    %v341 = vunpack.c.h.b16 %v147
    %v342 = vunpack.c.l.b16 %v148
    %v343 = vunpack.c.h.b16 %v148
    %v344 = vunpack.c.l.b16 %v149
    %v345 = vunpack.c.h.b16 %v149
    %v346 = vunpack.c.l.b16 %v150
    %v347 = vunpack.c.h.b16 %v150
    %v348 = vunpack.c.l.b16 %v151
    %v349 = vunpack.c.h.b16 %v151
    %v350 = vunpack.c.l.b16 %v152
    %v351 = vunpack.c.h.b16 %v152
    %v352 = vunpack.c.l.b16 %v153
    %v353 = vunpack.c.h.b16 %v153
    %v354 = vunpack.c.l.b16 %v154
    %v355 = vunpack.c.h.b16 %v154
    %v356 = vunpack.c.l.b16 %v155
    %v357 = vunpack.c.h.b16 %v155
    %v358 = vunpack.c.l.b16 %v156
    %v359 = vunpack.c.h.b16 %v156
    %v360 = vunpack.c.l.b16 %v157
    %v361 = vunpack.c.h.b16 %v157
    %v362 = vunpack.c.l.b16 %v158
    %v363 = vunpack.c.h.b16 %v158
    %v364 = vunpack.c.l.b16 %v159
    %v365 = vunpack.c.h.b16 %v159
    %v366 = vunpack.c.l.b16 %v160
    %v367 = vunpack.c.h.b16 %v160
    %v368 = vunpack.c.l.b16 %v161
    %v369 = vunpack.c.h.b16 %v161
    %v370 = vunpack.c.l.b16 %v162
    %v371 = vunpack.c.h.b16 %v162
    %v372 = vunpack.c.l.b16 %v163
    %v373 = vunpack.c.h.b16 %v163
    %v374 = vunpack.c.l.b16 %v164
    %v375 = vunpack.c.h.b16 %v164
    %v376 = vunpack.c.l.b16 %v165
    %v377 = vunpack.c.h.b16 %v165
    %v378 = vunpack.c.l.b16 %v166
    %v379 = vunpack.c.h.b16 %v166
    %v380 = vunpack.c.l.b16 %v167
    %v381 = vunpack.c.h.b16 %v167
    %v382 = vpack.c.b16 %v258, %v254
    %v383 = vpack.c.b16 %v259, %v255
    %v384 = vpack.c.b16 %v260, %v256
    %v385 = vpack.c.b16 %v261, %v257
    %v386 = vpack.c.b16 %v266, %v262
    %v387 = vpack.c.b16 %v267, %v263
    %v388 = vpack.c.b16 %v268, %v264
    %v389 = vpack.c.b16 %v269, %v265
    %v390 = vpack.c.b16 %v274, %v270
    %v391 = vpack.c.b16 %v275, %v271
    %v392 = vpack.c.b16 %v276, %v272
    %v393 = vpack.c.b16 %v277, %v273
    %v394 = vpack.c.b16 %v282, %v278
    %v395 = vpack.c.b16 %v283, %v279
    %v396 = vpack.c.b16 %v284, %v280
    %v397 = vpack.c.b16 %v285, %v281
    %v398 = vpack.c.b16 %v290, %v286
    %v399 = vpack.c.b16 %v291, %v287
    %v400 = vpack.c.b16 %v292, %v288
    %v401 = vpack.c.b16 %v293, %v289
    %v402 = vpack.c.b16 %v298, %v294
    %v403 = vpack.c.b16 %v299, %v295
    %v404 = vpack.c.b16 %v300, %v296
    %v405 = vpack.c.b16 %v301, %v297
    %v406 = vpack.c.b16 %v306, %v302
    %v407 = vpack.c.b16 %v307, %v303
    %v408 = vpack.c.b16 %v308, %v304
    %v409 = vpack.c.b16 %v309, %v305
    %v410 = vpack.c.b16 %v314, %v310
    %v411 = vpack.c.b16 %v315, %v311
    %v412 = vpack.c.b16 %v316, %v312
    %v413 = vpack.c.b16 %v317, %v313
    %v414 = vpack.c.b16 %v322, %v318
    %v415 = vpack.c.b16 %v323, %v319
    %v416 = vpack.c.b16 %v324, %v320
    %v417 = vpack.c.b16 %v325, %v321
    %v418 = vpack.c.b16 %v330, %v326
    %v419 = vpack.c.b16 %v331, %v327
    %v420 = vpack.c.b16 %v332, %v328
    %v421 = vpack.c.b16 %v333, %v329
    %v422 = vpack.c.b16 %v338, %v334
    %v423 = vpack.c.b16 %v339, %v335
    %v424 = vpack.c.b16 %v340, %v336
    %v425 = vpack.c.b16 %v341, %v337
    %v426 = vpack.c.b16 %v346, %v342
    %v427 = vpack.c.b16 %v347, %v343
    %v428 = vpack.c.b16 %v348, %v344
    %v429 = vpack.c.b16 %v349, %v345
    %v430 = vpack.c.b16 %v354, %v350
    %v431 = vpack.c.b16 %v355, %v351
    %v432 = vpack.c.b16 %v356, %v352
    %v433 = vpack.c.b16 %v357, %v353
    %v434 = vpack.c.b16 %v362, %v358
    %v435 = vpack.c.b16 %v363, %v359
    %v436 = vpack.c.b16 %v364, %v360
    %v437 = vpack.c.b16 %v365, %v361
    %v438 = vpack.c.b16 %v370, %v366
    %v439 = vpack.c.b16 %v371, %v367
    %v440 = vpack.c.b16 %v372, %v368
    %v441 = vpack.c.b16 %v373, %v369
    %v442 = vpack.c.b16 %v378, %v374
    %v443 = vpack.c.b16 %v379, %v375
    %v444 = vpack.c.b16 %v380, %v376
    %v445 = vpack.c.b16 %v381, %v377
    %510 = vmatprep.subr.bf16.mxu0 %v411
    %511 = vmatpush1.bf16.msra.mxu0 %v410
    %512 = vmatprep.subr.bf16.mxu0 %v407
    %513 = vmatpush1.bf16.msra.mxu0 %v406
    %514 = vmatprep.subr.bf16.mxu0 %v403
    %515 = vmatpush1.bf16.msra.mxu0 %v402
    %516 = vmatprep.subr.bf16.mxu0 %v399
    %517 = vmatpush1.bf16.msra.mxu0 %v398
    %518 = vmatprep.subr.bf16.mxu0 %v395
    %519 = vmatpush1.bf16.msra.mxu0 %v394
    %520 = vmatprep.subr.bf16.mxu0 %v391
    %521 = vmatpush1.bf16.msra.mxu0 %v390
    %522 = vmatprep.subr.bf16.mxu0 %v387
    %523 = vmatpush1.bf16.msra.mxu0 %v386
    %524 = vmatprep.subr.bf16.mxu0 %v383
    %525 = vmatpush1.bf16.msra.mxu0 %v382
    %526 = vmatprep.subr.bf16.mxu0 %v443
    %527 = vmatpush2.bf16.msra.mxu0 %v442
    %528 = vmatprep.subr.bf16.mxu0 %v439
    %529 = vmatpush2.bf16.msra.mxu0 %v438
    %530 = vmatprep.subr.bf16.mxu0 %v435
    %531 = vmatpush2.bf16.msra.mxu0 %v434
    %532 = vmatprep.subr.bf16.mxu0 %v431
    %533 = vmatpush2.bf16.msra.mxu0 %v430
    %534 = vmatprep.subr.bf16.mxu0 %v427
    %535 = vmatpush2.bf16.msra.mxu0 %v426
    %536 = vmatprep.subr.bf16.mxu0 %v423
    %537 = vmatpush2.bf16.msra.mxu0 %v422
    %538 = vmatprep.subr.bf16.mxu0 %v419
    %539 = vmatpush2.bf16.msra.mxu0 %v418
    %540 = vmatprep.subr.bf16.mxu0 %v415
    %541 = vmatpush2.bf16.msra.mxu0 %v414
    %542 = vmatprep.mubr.bf16.mxu0 %v101
    %543 = vmatmul.mubr.bf16.gmra.mxu0 %v100
    %v544 = vpop.f32.mrf.mxu0
    %v545 = vadd.f32 %v173, %v544
    %v546 = vpop.f32.mrf.mxu0
    %v547 = vadd.f32 %v177, %v546
    %v548 = vpop.f32.mrf.mxu0
    %v549 = vadd.f32 %v173, %v548
    %v550 = vpop.f32.mrf.mxu0
    %v551 = vadd.f32 %v177, %v550
    %552 = vmatprep.mubr.bf16.mxu0 %v103
    %553 = vmatmul.mubr.bf16.gmra.mxu0 %v102
    %v554 = vpop.f32.mrf.mxu0
    %v555 = vadd.f32 %v173, %v554
    %v556 = vpop.f32.mrf.mxu0
    %v557 = vadd.f32 %v177, %v556
    %v558 = vpop.f32.mrf.mxu0
    %v559 = vadd.f32 %v173, %v558
    %v560 = vpop.f32.mrf.mxu0
    %v561 = vadd.f32 %v177, %v560
    %562 = vdwg.mxu0
    %563 = vmatprep.subr.bf16.mxu0 %v413
    %564 = vmatpush1.bf16.msra.mxu0 %v412
    %565 = vmatprep.subr.bf16.mxu0 %v409
    %566 = vmatpush1.bf16.msra.mxu0 %v408
    %567 = vmatprep.subr.bf16.mxu0 %v405
    %568 = vmatpush1.bf16.msra.mxu0 %v404
    %569 = vmatprep.subr.bf16.mxu0 %v401
    %570 = vmatpush1.bf16.msra.mxu0 %v400
    %571 = vmatprep.subr.bf16.mxu0 %v397
    %572 = vmatpush1.bf16.msra.mxu0 %v396
    %573 = vmatprep.subr.bf16.mxu0 %v393
    %574 = vmatpush1.bf16.msra.mxu0 %v392
    %575 = vmatprep.subr.bf16.mxu0 %v389
    %576 = vmatpush1.bf16.msra.mxu0 %v388
    %577 = vmatprep.subr.bf16.mxu0 %v385
    %578 = vmatpush1.bf16.msra.mxu0 %v384
    %579 = vmatprep.subr.bf16.mxu0 %v445
    %580 = vmatpush2.bf16.msra.mxu0 %v444
    %581 = vmatprep.subr.bf16.mxu0 %v441
    %582 = vmatpush2.bf16.msra.mxu0 %v440
    %583 = vmatprep.subr.bf16.mxu0 %v437
    %584 = vmatpush2.bf16.msra.mxu0 %v436
    %585 = vmatprep.subr.bf16.mxu0 %v433
    %586 = vmatpush2.bf16.msra.mxu0 %v432
    %587 = vmatprep.subr.bf16.mxu0 %v429
    %588 = vmatpush2.bf16.msra.mxu0 %v428
    %589 = vmatprep.subr.bf16.mxu0 %v425
    %590 = vmatpush2.bf16.msra.mxu0 %v424
    %591 = vmatprep.subr.bf16.mxu0 %v421
    %592 = vmatpush2.bf16.msra.mxu0 %v420
    %593 = vmatprep.subr.bf16.mxu0 %v417
    %594 = vmatpush2.bf16.msra.mxu0 %v416
    %595 = vmatprep.mubr.bf16.mxu0 %v101
    %596 = vmatmul.mubr.bf16.gmra.mxu0 %v100
    %v597 = vpop.f32.mrf.mxu0
    %v598 = vadd.f32 %v181, %v597
    %v599 = vpop.f32.mrf.mxu0
    %v600 = vadd.f32 %v185, %v599
    %v601 = vpop.f32.mrf.mxu0
    %v602 = vadd.f32 %v181, %v601
    %v603 = vpop.f32.mrf.mxu0
    %v604 = vadd.f32 %v185, %v603
    %605 = vmatprep.mubr.bf16.mxu0 %v103
    %606 = vmatmul.mubr.bf16.gmra.mxu0 %v102
    %v607 = vpop.f32.mrf.mxu0
    %v608 = vadd.f32 %v181, %v607
    %v609 = vpop.f32.mrf.mxu0
    %v610 = vadd.f32 %v185, %v609
    %v611 = vpop.f32.mrf.mxu0
    %v612 = vadd.f32 %v181, %v611
    %v613 = vpop.f32.mrf.mxu0
    %v614 = vadd.f32 %v185, %v613
    %615 = vdwg.mxu0
    %v616 = vadd.f32 %v545, 3.0
    %v617 = vadd.f32 %v547, 3.0
    %v618 = vadd.f32 %v598, 3.0
    %v619 = vadd.f32 %v600, 3.0
    %v620 = vadd.f32 %v549, 3.0
    %v621 = vadd.f32 %v551, 3.0
    %v622 = vadd.f32 %v602, 3.0
    %v623 = vadd.f32 %v604, 3.0
    %v624 = vadd.f32 %v555, 3.0
    %v625 = vadd.f32 %v557, 3.0
    %v626 = vadd.f32 %v608, 3.0
    %v627 = vadd.f32 %v610, 3.0
    %v628 = vadd.f32 %v559, 3.0
    %v629 = vadd.f32 %v561, 3.0
    %v630 = vadd.f32 %v612, 3.0
    %v631 = vadd.f32 %v614, 3.0
    %v632 = vmax.f32 %v616, 0.0
    %v633 = vmax.f32 %v617, 0.0
    %v634 = vmax.f32 %v618, 0.0
    %v635 = vmax.f32 %v619, 0.0
    %v636 = vmax.f32 %v620, 0.0
    %v637 = vmax.f32 %v621, 0.0
    %v638 = vmax.f32 %v622, 0.0
    %v639 = vmax.f32 %v623, 0.0
    %v640 = vmax.f32 %v624, 0.0
    %v641 = vmax.f32 %v625, 0.0
    %v642 = vmax.f32 %v626, 0.0
    %v643 = vmax.f32 %v627, 0.0
    %v644 = vmax.f32 %v628, 0.0
    %v645 = vmax.f32 %v629, 0.0
    %v646 = vmax.f32 %v630, 0.0
    %v647 = vmax.f32 %v631, 0.0
    %v648 = vmin.f32 %v632, 6.0
    %v649 = vmin.f32 %v633, 6.0
    %v650 = vmin.f32 %v634, 6.0
    %v651 = vmin.f32 %v635, 6.0
    %v652 = vmin.f32 %v636, 6.0
    %v653 = vmin.f32 %v637, 6.0
    %v654 = vmin.f32 %v638, 6.0
    %v655 = vmin.f32 %v639, 6.0
    %v656 = vmin.f32 %v640, 6.0
    %v657 = vmin.f32 %v641, 6.0
    %v658 = vmin.f32 %v642, 6.0
    %v659 = vmin.f32 %v643, 6.0
    %v660 = vmin.f32 %v644, 6.0
    %v661 = vmin.f32 %v645, 6.0
    %v662 = vmin.f32 %v646, 6.0
    %v663 = vmin.f32 %v647, 6.0
    %v664 = vmul.f32 %v545, %v648
    %v665 = vmul.f32 %v547, %v649
    %v666 = vmul.f32 %v598, %v650
    %v667 = vmul.f32 %v600, %v651
    %v668 = vmul.f32 %v549, %v652
    %v669 = vmul.f32 %v551, %v653
    %v670 = vmul.f32 %v602, %v654
    %v671 = vmul.f32 %v604, %v655
    %v672 = vmul.f32 %v555, %v656
    %v673 = vmul.f32 %v557, %v657
    %v674 = vmul.f32 %v608, %v658
    %v675 = vmul.f32 %v610, %v659
    %v676 = vmul.f32 %v559, %v660
    %v677 = vmul.f32 %v561, %v661
    %v678 = vmul.f32 %v612, %v662
    %v679 = vmul.f32 %v614, %v663
    %v680 = vmul.f32 %v664, 0.16666667
    %v681 = vmul.f32 %v665, 0.16666667
    %v682 = vmul.f32 %v666, 0.16666667
    %v683 = vmul.f32 %v667, 0.16666667
    %v684 = vmul.f32 %v668, 0.16666667
    %v685 = vmul.f32 %v669, 0.16666667
    %v686 = vmul.f32 %v670, 0.16666667
    %v687 = vmul.f32 %v671, 0.16666667
    %v688 = vmul.f32 %v672, 0.16666667
    %v689 = vmul.f32 %v673, 0.16666667
    %v690 = vmul.f32 %v674, 0.16666667
    %v691 = vmul.f32 %v675, 0.16666667
    %v692 = vmul.f32 %v676, 0.16666667
    %v693 = vmul.f32 %v677, 0.16666667
    %v694 = vmul.f32 %v678, 0.16666667
    %v695 = vmul.f32 %v679, 0.16666667
    %712 = vrot.lane.b32.xlu0 %v680, 32
    %v713 = vpop.permute.xlu0 %712
    %714 = vrot.lane.b32.xlu0 %v681, 32
    %v715 = vpop.permute.xlu0 %714
    %716 = vrot.lane.b32.xlu0 %v682, 32
    %v717 = vpop.permute.xlu0 %716
    %718 = vrot.lane.b32.xlu0 %v683, 32
    %v719 = vpop.permute.xlu0 %718
    %720 = vrot.lane.b32.xlu0 %v684, 32
    %v721 = vpop.permute.xlu0 %720
    %722 = vrot.lane.b32.xlu0 %v685, 32
    %v723 = vpop.permute.xlu0 %722
    %724 = vrot.lane.b32.xlu0 %v686, 32
    %v725 = vpop.permute.xlu0 %724
    %726 = vrot.lane.b32.xlu0 %v687, 32
    %v727 = vpop.permute.xlu0 %726
    %728 = vrot.lane.b32.xlu0 %v688, 32
    %v729 = vpop.permute.xlu0 %728
    %730 = vrot.lane.b32.xlu0 %v689, 32
    %v731 = vpop.permute.xlu0 %730
    %732 = vrot.lane.b32.xlu0 %v690, 32
    %v733 = vpop.permute.xlu0 %732
    %734 = vrot.lane.b32.xlu0 %v691, 32
    %v735 = vpop.permute.xlu0 %734
    %736 = vrot.lane.b32.xlu0 %v692, 32
    %v737 = vpop.permute.xlu0 %736
    %738 = vrot.lane.b32.xlu0 %v693, 32
    %v739 = vpop.permute.xlu0 %738
    %740 = vrot.lane.b32.xlu0 %v694, 32
    %v741 = vpop.permute.xlu0 %740
    %742 = vrot.lane.b32.xlu0 %v695, 32
    %v743 = vpop.permute.xlu0 %742
    %vm744 = vcmask 261120
    %v745 = vsel %vm744, %v713, %v715
    %v746 = vsel %vm744, %v715, %v717
    %v747 = vsel %vm744, %v717, %v719
    %v748 = vsel %vm744, %v721, %v723
    %v749 = vsel %vm744, %v723, %v725
    %v750 = vsel %vm744, %v725, %v727
    %v751 = vsel %vm744, %v729, %v731
    %v752 = vsel %vm744, %v731, %v733
    %v753 = vsel %vm744, %v733, %v735
    %v754 = vsel %vm744, %v737, %v739
    %v755 = vsel %vm744, %v739, %v741
    %v756 = vsel %vm744, %v741, %v743
    %v773 = vsel %vm744, 0.0, %v713
    %v774 = vsel %vm744, 0.0, %v721
    %v775 = vsel %vm744, 0.0, %v729
    %v776 = vsel %vm744, 0.0, %v737
    %777 = vrot.lane.b32.xlu0 %v680, 96
    %v778 = vpop.permute.xlu0 %777
    %779 = vrot.lane.b32.xlu0 %v681, 96
    %v780 = vpop.permute.xlu0 %779
    %781 = vrot.lane.b32.xlu0 %v682, 96
    %v782 = vpop.permute.xlu0 %781
    %783 = vrot.lane.b32.xlu0 %v683, 96
    %v784 = vpop.permute.xlu0 %783
    %785 = vrot.lane.b32.xlu0 %v684, 96
    %v786 = vpop.permute.xlu0 %785
    %787 = vrot.lane.b32.xlu0 %v685, 96
    %v788 = vpop.permute.xlu0 %787
    %789 = vrot.lane.b32.xlu0 %v686, 96
    %v790 = vpop.permute.xlu0 %789
    %791 = vrot.lane.b32.xlu0 %v687, 96
    %v792 = vpop.permute.xlu0 %791
    %793 = vrot.lane.b32.xlu0 %v688, 96
    %v794 = vpop.permute.xlu0 %793
    %795 = vrot.lane.b32.xlu0 %v689, 96
    %v796 = vpop.permute.xlu0 %795
    %797 = vrot.lane.b32.xlu0 %v690, 96
    %v798 = vpop.permute.xlu0 %797
    %799 = vrot.lane.b32.xlu0 %v691, 96
    %v800 = vpop.permute.xlu0 %799
    %801 = vrot.lane.b32.xlu0 %v692, 96
    %v802 = vpop.permute.xlu0 %801
    %803 = vrot.lane.b32.xlu0 %v693, 96
    %v804 = vpop.permute.xlu0 %803
    %805 = vrot.lane.b32.xlu0 %v694, 96
    %v806 = vpop.permute.xlu0 %805
    %807 = vrot.lane.b32.xlu0 %v695, 96
    %v808 = vpop.permute.xlu0 %807
    %vm809 = vcmask 785408
    %v810 = vsel %vm809, %v778, %v780
    %v811 = vsel %vm809, %v780, %v782
    %v812 = vsel %vm809, %v782, %v784
    %v813 = vsel %vm809, %v786, %v788
    %v814 = vsel %vm809, %v788, %v790
    %v815 = vsel %vm809, %v790, %v792
    %v816 = vsel %vm809, %v794, %v796
    %v817 = vsel %vm809, %v796, %v798
    %v818 = vsel %vm809, %v798, %v800
    %v819 = vsel %vm809, %v802, %v804
    %v820 = vsel %vm809, %v804, %v806
    %v821 = vsel %vm809, %v806, %v808
    %v838 = vsel %vm809, %v784, 0.0
    %v839 = vsel %vm809, %v792, 0.0
    %v840 = vsel %vm809, %v800, 0.0
    %v841 = vsel %vm809, %v808, 0.0
    %v842 = vld [vmem:[#allocation7] sm:$0xff]
    %v843 = vld [vmem:[#allocation7 + $0x8] sm:$0xff]
    %v844 = vld [vmem:[#allocation7 + $0x10] sm:$0xff]
    %v845 = vld [vmem:[#allocation7 + $0x18] sm:$0xff]
    %v846 = vld [vmem:[#allocation7 + $0x20] sm:$0x1]
    %v847 = vld [vmem:[#allocation7 + $0x28] sm:$0x1]
    %v848 = vld [vmem:[#allocation7 + $0x30] sm:$0x1]
    %v849 = vld [vmem:[#allocation7 + $0x38] sm:$0x1]
    %v850 = vlaneseq
    %v851 = vshrl.u32 %v850, 7
    %v852 = vsub.s32 3, %v851
    %v853 = vrot.slane %v842, %v852
    %v854 = vlaneseq
    %v855 = vshrl.u32 %v854, 7
    %v856 = vsub.s32 3, %v855
    %v857 = vrot.slane %v843, %v856
    %v858 = vlaneseq
    %v859 = vshrl.u32 %v858, 7
    %v860 = vsub.s32 3, %v859
    %v861 = vrot.slane %v844, %v860
    %v862 = vlaneseq
    %v863 = vshrl.u32 %v862, 7
    %v864 = vsub.s32 3, %v863
    %v865 = vrot.slane %v845, %v864
    %v866 = vmul.f32 %v773, %v853
    %v867 = vmul.f32 %v745, %v857
    %v868 = vmul.f32 %v746, %v861
    %v869 = vmul.f32 %v747, %v865
    %v870 = vmul.f32 %v774, %v853
    %v871 = vmul.f32 %v748, %v857
    %v872 = vmul.f32 %v749, %v861
    %v873 = vmul.f32 %v750, %v865
    %v874 = vmul.f32 %v775, %v853
    %v875 = vmul.f32 %v751, %v857
    %v876 = vmul.f32 %v752, %v861
    %v877 = vmul.f32 %v753, %v865
    %v878 = vmul.f32 %v776, %v853
    %v879 = vmul.f32 %v754, %v857
    %v880 = vmul.f32 %v755, %v861
    %v881 = vmul.f32 %v756, %v865
    %v882 = vlaneseq
    %v883 = vshrl.u32 %v882, 7
    %v884 = vsub.s32 4, %v883
    %v885 = vrot.slane %v842, %v884
    %v886 = vlaneseq
    %v887 = vshrl.u32 %v886, 7
    %v888 = vsub.s32 4, %v887
    %v889 = vrot.slane %v843, %v888
    %v890 = vlaneseq
    %v891 = vshrl.u32 %v890, 7
    %v892 = vsub.s32 4, %v891
    %v893 = vrot.slane %v844, %v892
    %v894 = vlaneseq
    %v895 = vshrl.u32 %v894, 7
    %v896 = vsub.s32 4, %v895
    %v897 = vrot.slane %v845, %v896
    %v898 = vmul.f32 %v680, %v885
    %v899 = vmul.f32 %v681, %v889
    %v900 = vmul.f32 %v682, %v893
    %v901 = vmul.f32 %v683, %v897
    %v902 = vmul.f32 %v684, %v885
    %v903 = vmul.f32 %v685, %v889
    %v904 = vmul.f32 %v686, %v893
    %v905 = vmul.f32 %v687, %v897
    %v906 = vmul.f32 %v688, %v885
    %v907 = vmul.f32 %v689, %v889
    %v908 = vmul.f32 %v690, %v893
    %v909 = vmul.f32 %v691, %v897
    %v910 = vmul.f32 %v692, %v885
    %v911 = vmul.f32 %v693, %v889
    %v912 = vmul.f32 %v694, %v893
    %v913 = vmul.f32 %v695, %v897
    %v914 = vadd.f32 %v866, %v898
    %v915 = vadd.f32 %v867, %v899
    %v916 = vadd.f32 %v868, %v900
    %v917 = vadd.f32 %v869, %v901
    %v918 = vadd.f32 %v870, %v902
    %v919 = vadd.f32 %v871, %v903
    %v920 = vadd.f32 %v872, %v904
    %v921 = vadd.f32 %v873, %v905
    %v922 = vadd.f32 %v874, %v906
    %v923 = vadd.f32 %v875, %v907
    %v924 = vadd.f32 %v876, %v908
    %v925 = vadd.f32 %v877, %v909
    %v926 = vadd.f32 %v878, %v910
    %v927 = vadd.f32 %v879, %v911
    %v928 = vadd.f32 %v880, %v912
    %v929 = vadd.f32 %v881, %v913
    %v930 = vlaneseq
    %v931 = vshrl.u32 %v930, 7
    %v932 = vsub.s32 5, %v931
    %v933 = vrot.slane %v842, %v932
    %v934 = vlaneseq
    %v935 = vshrl.u32 %v934, 7
    %v936 = vsub.s32 5, %v935
    %v937 = vrot.slane %v843, %v936
    %v938 = vlaneseq
    %v939 = vshrl.u32 %v938, 7
    %v940 = vsub.s32 5, %v939
    %v941 = vrot.slane %v844, %v940
    %v942 = vlaneseq
    %v943 = vshrl.u32 %v942, 7
    %v944 = vsub.s32 5, %v943
    %v945 = vrot.slane %v845, %v944
    %v946 = vmul.f32 %v810, %v933
    %v947 = vmul.f32 %v811, %v937
    %v948 = vmul.f32 %v812, %v941
    %v949 = vmul.f32 %v838, %v945
    %v950 = vmul.f32 %v813, %v933
    %v951 = vmul.f32 %v814, %v937
    %v952 = vmul.f32 %v815, %v941
    %v953 = vmul.f32 %v839, %v945
    %v954 = vmul.f32 %v816, %v933
    %v955 = vmul.f32 %v817, %v937
    %v956 = vmul.f32 %v818, %v941
    %v957 = vmul.f32 %v840, %v945
    %v958 = vmul.f32 %v819, %v933
    %v959 = vmul.f32 %v820, %v937
    %v960 = vmul.f32 %v821, %v941
    %v961 = vmul.f32 %v841, %v945
    %v962 = vadd.f32 %v914, %v946
    %v963 = vadd.f32 %v915, %v947
    %v964 = vadd.f32 %v916, %v948
    %v965 = vadd.f32 %v917, %v949
    %v966 = vadd.f32 %v918, %v950
    %v967 = vadd.f32 %v919, %v951
    %v968 = vadd.f32 %v920, %v952
    %v969 = vadd.f32 %v921, %v953
    %v970 = vadd.f32 %v922, %v954
    %v971 = vadd.f32 %v923, %v955
    %v972 = vadd.f32 %v924, %v956
    %v973 = vadd.f32 %v925, %v957
    %v974 = vadd.f32 %v926, %v958
    %v975 = vadd.f32 %v927, %v959
    %v976 = vadd.f32 %v928, %v960
    %v977 = vadd.f32 %v929, %v961
    %v978 = vld [vmem:[%s4] sm:$0xf]
    %v980 = vlaneseq
    %v981 = vshrl.u32 %v980, 7
    %v982 = vsub.s32 0, %v981
    %v983 = vrot.slane %v978, %v982
    %v984 = vlaneseq
    %v985 = vshrl.u32 %v984, 7
    %v986 = vsub.s32 1, %v985
    %v987 = vrot.slane %v978, %v986
    %v988 = vlaneseq
    %v989 = vshrl.u32 %v988, 7
    %v990 = vsub.s32 2, %v989
    %v991 = vrot.slane %v978, %v990
    %v992 = vlaneseq
    %v993 = vshrl.u32 %v992, 7
    %v994 = vsub.s32 3, %v993
    %v995 = vrot.slane %v978, %v994
    %v1000 = vadd.f32 %v962, %v983
    %v1001 = vadd.f32 %v963, %v987
    %v1002 = vadd.f32 %v964, %v991
    %v1003 = vadd.f32 %v965, %v995
    %v1004 = vadd.f32 %v966, %v983
    %v1005 = vadd.f32 %v967, %v987
    %v1006 = vadd.f32 %v968, %v991
    %v1007 = vadd.f32 %v969, %v995
    %v1008 = vadd.f32 %v970, %v983
    %v1009 = vadd.f32 %v971, %v987
    %v1010 = vadd.f32 %v972, %v991
    %v1011 = vadd.f32 %v973, %v995
    %v1012 = vadd.f32 %v974, %v983
    %v1013 = vadd.f32 %v975, %v987
    %v1014 = vadd.f32 %v976, %v991
    %v1015 = vadd.f32 %v977, %v995
    %v1016 = vlaneseq
    %v1017 = vshrl.u32 %v1016, 7
    %v1018 = vsub.s32 0, %v1017
    %v1019 = vrot.slane %v842, %v1018
    %v1020 = vlaneseq
    %v1021 = vshrl.u32 %v1020, 7
    %v1022 = vsub.s32 0, %v1021
    %v1023 = vrot.slane %v843, %v1022
    %v1024 = vlaneseq
    %v1025 = vshrl.u32 %v1024, 7
    %v1026 = vsub.s32 0, %v1025
    %v1027 = vrot.slane %v844, %v1026
    %v1028 = vlaneseq
    %v1029 = vshrl.u32 %v1028, 7
    %v1030 = vsub.s32 0, %v1029
    %v1031 = vrot.slane %v845, %v1030
    %v1032 = vmul.f32 %v773, %v1019
    %v1033 = vmul.f32 %v745, %v1023
    %v1034 = vmul.f32 %v746, %v1027
    %v1035 = vmul.f32 %v747, %v1031
    %v1036 = vmul.f32 %v774, %v1019
    %v1037 = vmul.f32 %v748, %v1023
    %v1038 = vmul.f32 %v749, %v1027
    %v1039 = vmul.f32 %v750, %v1031
    %v1040 = vmul.f32 %v775, %v1019
    %v1041 = vmul.f32 %v751, %v1023
    %v1042 = vmul.f32 %v752, %v1027
    %v1043 = vmul.f32 %v753, %v1031
    %v1044 = vmul.f32 %v776, %v1019
    %v1045 = vmul.f32 %v754, %v1023
    %v1046 = vmul.f32 %v755, %v1027
    %v1047 = vmul.f32 %v756, %v1031
    %v1048 = vlaneseq
    %v1049 = vshrl.u32 %v1048, 7
    %v1050 = vsub.s32 1, %v1049
    %v1051 = vrot.slane %v842, %v1050
    %v1052 = vlaneseq
    %v1053 = vshrl.u32 %v1052, 7
    %v1054 = vsub.s32 1, %v1053
    %v1055 = vrot.slane %v843, %v1054
    %v1056 = vlaneseq
    %v1057 = vshrl.u32 %v1056, 7
    %v1058 = vsub.s32 1, %v1057
    %v1059 = vrot.slane %v844, %v1058
    %v1060 = vlaneseq
    %v1061 = vshrl.u32 %v1060, 7
    %v1062 = vsub.s32 1, %v1061
    %v1063 = vrot.slane %v845, %v1062
    %v1064 = vmul.f32 %v680, %v1051
    %v1065 = vmul.f32 %v681, %v1055
    %v1066 = vmul.f32 %v682, %v1059
    %v1067 = vmul.f32 %v683, %v1063
    %v1068 = vmul.f32 %v684, %v1051
    %v1069 = vmul.f32 %v685, %v1055
    %v1070 = vmul.f32 %v686, %v1059
    %v1071 = vmul.f32 %v687, %v1063
    %v1072 = vmul.f32 %v688, %v1051
    %v1073 = vmul.f32 %v689, %v1055
    %v1074 = vmul.f32 %v690, %v1059
    %v1075 = vmul.f32 %v691, %v1063
    %v1076 = vmul.f32 %v692, %v1051
    %v1077 = vmul.f32 %v693, %v1055
    %v1078 = vmul.f32 %v694, %v1059
    %v1079 = vmul.f32 %v695, %v1063
    %v1080 = vadd.f32 %v1032, %v1064
    %v1081 = vadd.f32 %v1033, %v1065
    %v1082 = vadd.f32 %v1034, %v1066
    %v1083 = vadd.f32 %v1035, %v1067
    %v1084 = vadd.f32 %v1036, %v1068
    %v1085 = vadd.f32 %v1037, %v1069
    %v1086 = vadd.f32 %v1038, %v1070
    %v1087 = vadd.f32 %v1039, %v1071
    %v1088 = vadd.f32 %v1040, %v1072
    %v1089 = vadd.f32 %v1041, %v1073
    %v1090 = vadd.f32 %v1042, %v1074
    %v1091 = vadd.f32 %v1043, %v1075
    %v1092 = vadd.f32 %v1044, %v1076
    %v1093 = vadd.f32 %v1045, %v1077
    %v1094 = vadd.f32 %v1046, %v1078
    %v1095 = vadd.f32 %v1047, %v1079
    %v1096 = vlaneseq
    %v1097 = vshrl.u32 %v1096, 7
    %v1098 = vsub.s32 2, %v1097
    %v1099 = vrot.slane %v842, %v1098
    %v1100 = vlaneseq
    %v1101 = vshrl.u32 %v1100, 7
    %v1102 = vsub.s32 2, %v1101
    %v1103 = vrot.slane %v843, %v1102
    %v1104 = vlaneseq
    %v1105 = vshrl.u32 %v1104, 7
    %v1106 = vsub.s32 2, %v1105
    %v1107 = vrot.slane %v844, %v1106
    %v1108 = vlaneseq
    %v1109 = vshrl.u32 %v1108, 7
    %v1110 = vsub.s32 2, %v1109
    %v1111 = vrot.slane %v845, %v1110
    %v1112 = vmul.f32 %v810, %v1099
    %v1113 = vmul.f32 %v811, %v1103
    %v1114 = vmul.f32 %v812, %v1107
    %v1115 = vmul.f32 %v838, %v1111
    %v1116 = vmul.f32 %v813, %v1099
    %v1117 = vmul.f32 %v814, %v1103
    %v1118 = vmul.f32 %v815, %v1107
    %v1119 = vmul.f32 %v839, %v1111
    %v1120 = vmul.f32 %v816, %v1099
    %v1121 = vmul.f32 %v817, %v1103
    %v1122 = vmul.f32 %v818, %v1107
    %v1123 = vmul.f32 %v840, %v1111
    %v1124 = vmul.f32 %v819, %v1099
    %v1125 = vmul.f32 %v820, %v1103
    %v1126 = vmul.f32 %v821, %v1107
    %v1127 = vmul.f32 %v841, %v1111
    %v1128 = vadd.f32 %v1080, %v1112
    %v1129 = vadd.f32 %v1081, %v1113
    %v1130 = vadd.f32 %v1082, %v1114
    %v1131 = vadd.f32 %v1083, %v1115
    %v1132 = vadd.f32 %v1084, %v1116
    %v1133 = vadd.f32 %v1085, %v1117
    %v1134 = vadd.f32 %v1086, %v1118
    %v1135 = vadd.f32 %v1087, %v1119
    %v1136 = vadd.f32 %v1088, %v1120
    %v1137 = vadd.f32 %v1089, %v1121
    %v1138 = vadd.f32 %v1090, %v1122
    %v1139 = vadd.f32 %v1091, %v1123
    %v1140 = vadd.f32 %v1092, %v1124
    %v1141 = vadd.f32 %v1093, %v1125
    %v1142 = vadd.f32 %v1094, %v1126
    %v1143 = vadd.f32 %v1095, %v1127
    %vm1160 = vcmask 1040384
    %v1161 = vrot.slane %v1128, 7
    %v1162 = vrot.slane %v1129, 7
    %v1163 = vrot.slane %v1130, 7
    %v1164 = vrot.slane %v1131, 7
    %v1165 = vrot.slane %v1132, 7
    %v1166 = vsel %vm1160, %v1161, %v1165
    %v1167 = vrot.slane %v1133, 7
    %v1168 = vsel %vm1160, %v1162, %v1167
    %v1169 = vrot.slane %v1134, 7
    %v1170 = vsel %vm1160, %v1163, %v1169
    %v1171 = vrot.slane %v1135, 7
    %v1172 = vsel %vm1160, %v1164, %v1171
    %v1173 = vrot.slane %v1136, 7
    %v1174 = vrot.slane %v1137, 7
    %v1175 = vrot.slane %v1138, 7
    %v1176 = vrot.slane %v1139, 7
    %v1177 = vrot.slane %v1140, 7
    %v1178 = vsel %vm1160, %v1173, %v1177
    %v1179 = vrot.slane %v1141, 7
    %v1180 = vsel %vm1160, %v1174, %v1179
    %v1181 = vrot.slane %v1142, 7
    %v1182 = vsel %vm1160, %v1175, %v1181
    %v1183 = vrot.slane %v1143, 7
    %v1184 = vsel %vm1160, %v1176, %v1183
    %v1201 = vsel %vm1160, 0.0, %v1161
    %v1202 = vsel %vm1160, 0.0, %v1162
    %v1203 = vsel %vm1160, 0.0, %v1163
    %v1204 = vsel %vm1160, 0.0, %v1164
    %v1205 = vsel %vm1160, 0.0, %v1173
    %v1206 = vsel %vm1160, 0.0, %v1174
    %v1207 = vsel %vm1160, 0.0, %v1175
    %v1208 = vsel %vm1160, 0.0, %v1176
    %v1209 = vadd.f32 %v1000, %v1201
    %v1210 = vadd.f32 %v1001, %v1202
    %v1211 = vadd.f32 %v1002, %v1203
    %v1212 = vadd.f32 %v1003, %v1204
    %v1213 = vadd.f32 %v1004, %v1166
    %v1214 = vadd.f32 %v1005, %v1168
    %v1215 = vadd.f32 %v1006, %v1170
    %v1216 = vadd.f32 %v1007, %v1172
    %v1217 = vadd.f32 %v1008, %v1205
    %v1218 = vadd.f32 %v1009, %v1206
    %v1219 = vadd.f32 %v1010, %v1207
    %v1220 = vadd.f32 %v1011, %v1208
    %v1221 = vadd.f32 %v1012, %v1178
    %v1222 = vadd.f32 %v1013, %v1180
    %v1223 = vadd.f32 %v1014, %v1182
    %v1224 = vadd.f32 %v1015, %v1184
    %v1225 = vlaneseq
    %v1226 = vshrl.u32 %v1225, 7
    %v1227 = vsub.s32 6, %v1226
    %v1228 = vrot.slane %v842, %v1227
    %v1229 = vlaneseq
    %v1230 = vshrl.u32 %v1229, 7
    %v1231 = vsub.s32 6, %v1230
    %v1232 = vrot.slane %v843, %v1231
    %v1233 = vlaneseq
    %v1234 = vshrl.u32 %v1233, 7
    %v1235 = vsub.s32 6, %v1234
    %v1236 = vrot.slane %v844, %v1235
    %v1237 = vlaneseq
    %v1238 = vshrl.u32 %v1237, 7
    %v1239 = vsub.s32 6, %v1238
    %v1240 = vrot.slane %v845, %v1239
    %v1241 = vmul.f32 %v773, %v1228
    %v1242 = vmul.f32 %v745, %v1232
    %v1243 = vmul.f32 %v746, %v1236
    %v1244 = vmul.f32 %v747, %v1240
    %v1245 = vmul.f32 %v774, %v1228
    %v1246 = vmul.f32 %v748, %v1232
    %v1247 = vmul.f32 %v749, %v1236
    %v1248 = vmul.f32 %v750, %v1240
    %v1249 = vmul.f32 %v775, %v1228
    %v1250 = vmul.f32 %v751, %v1232
    %v1251 = vmul.f32 %v752, %v1236
    %v1252 = vmul.f32 %v753, %v1240
    %v1253 = vmul.f32 %v776, %v1228
    %v1254 = vmul.f32 %v754, %v1232
    %v1255 = vmul.f32 %v755, %v1236
    %v1256 = vmul.f32 %v756, %v1240
    %v1257 = vlaneseq
    %v1258 = vshrl.u32 %v1257, 7
    %v1259 = vsub.s32 7, %v1258
    %v1260 = vrot.slane %v842, %v1259
    %v1261 = vlaneseq
    %v1262 = vshrl.u32 %v1261, 7
    %v1263 = vsub.s32 7, %v1262
    %v1264 = vrot.slane %v843, %v1263
    %v1265 = vlaneseq
    %v1266 = vshrl.u32 %v1265, 7
    %v1267 = vsub.s32 7, %v1266
    %v1268 = vrot.slane %v844, %v1267
    %v1269 = vlaneseq
    %v1270 = vshrl.u32 %v1269, 7
    %v1271 = vsub.s32 7, %v1270
    %v1272 = vrot.slane %v845, %v1271
    %v1273 = vmul.f32 %v680, %v1260
    %v1274 = vmul.f32 %v681, %v1264
    %v1275 = vmul.f32 %v682, %v1268
    %v1276 = vmul.f32 %v683, %v1272
    %v1277 = vmul.f32 %v684, %v1260
    %v1278 = vmul.f32 %v685, %v1264
    %v1279 = vmul.f32 %v686, %v1268
    %v1280 = vmul.f32 %v687, %v1272
    %v1281 = vmul.f32 %v688, %v1260
    %v1282 = vmul.f32 %v689, %v1264
    %v1283 = vmul.f32 %v690, %v1268
    %v1284 = vmul.f32 %v691, %v1272
    %v1285 = vmul.f32 %v692, %v1260
    %v1286 = vmul.f32 %v693, %v1264
    %v1287 = vmul.f32 %v694, %v1268
    %v1288 = vmul.f32 %v695, %v1272
    %v1289 = vadd.f32 %v1241, %v1273
    %v1290 = vadd.f32 %v1242, %v1274
    %v1291 = vadd.f32 %v1243, %v1275
    %v1292 = vadd.f32 %v1244, %v1276
    %v1293 = vadd.f32 %v1245, %v1277
    %v1294 = vadd.f32 %v1246, %v1278
    %v1295 = vadd.f32 %v1247, %v1279
    %v1296 = vadd.f32 %v1248, %v1280
    %v1297 = vadd.f32 %v1249, %v1281
    %v1298 = vadd.f32 %v1250, %v1282
    %v1299 = vadd.f32 %v1251, %v1283
    %v1300 = vadd.f32 %v1252, %v1284
    %v1301 = vadd.f32 %v1253, %v1285
    %v1302 = vadd.f32 %v1254, %v1286
    %v1303 = vadd.f32 %v1255, %v1287
    %v1304 = vadd.f32 %v1256, %v1288
    %v1305 = vlaneseq
    %v1306 = vshrl.u32 %v1305, 7
    %v1307 = vsub.s32 0, %v1306
    %v1308 = vrot.slane %v846, %v1307
    %v1309 = vlaneseq
    %v1310 = vshrl.u32 %v1309, 7
    %v1311 = vsub.s32 0, %v1310
    %v1312 = vrot.slane %v847, %v1311
    %v1313 = vlaneseq
    %v1314 = vshrl.u32 %v1313, 7
    %v1315 = vsub.s32 0, %v1314
    %v1316 = vrot.slane %v848, %v1315
    %v1317 = vlaneseq
    %v1318 = vshrl.u32 %v1317, 7
    %v1319 = vsub.s32 0, %v1318
    %v1320 = vrot.slane %v849, %v1319
    %v1321 = vmul.f32 %v810, %v1308
    %v1322 = vmul.f32 %v811, %v1312
    %v1323 = vmul.f32 %v812, %v1316
    %v1324 = vmul.f32 %v838, %v1320
    %v1325 = vmul.f32 %v813, %v1308
    %v1326 = vmul.f32 %v814, %v1312
    %v1327 = vmul.f32 %v815, %v1316
    %v1328 = vmul.f32 %v839, %v1320
    %v1329 = vmul.f32 %v816, %v1308
    %v1330 = vmul.f32 %v817, %v1312
    %v1331 = vmul.f32 %v818, %v1316
    %v1332 = vmul.f32 %v840, %v1320
    %v1333 = vmul.f32 %v819, %v1308
    %v1334 = vmul.f32 %v820, %v1312
    %v1335 = vmul.f32 %v821, %v1316
    %v1336 = vmul.f32 %v841, %v1320
    %v1337 = vadd.f32 %v1289, %v1321
    %v1338 = vadd.f32 %v1290, %v1322
    %v1339 = vadd.f32 %v1291, %v1323
    %v1340 = vadd.f32 %v1292, %v1324
    %v1341 = vadd.f32 %v1293, %v1325
    %v1342 = vadd.f32 %v1294, %v1326
    %v1343 = vadd.f32 %v1295, %v1327
    %v1344 = vadd.f32 %v1296, %v1328
    %v1345 = vadd.f32 %v1297, %v1329
    %v1346 = vadd.f32 %v1298, %v1330
    %v1347 = vadd.f32 %v1299, %v1331
    %v1348 = vadd.f32 %v1300, %v1332
    %v1349 = vadd.f32 %v1301, %v1333
    %v1350 = vadd.f32 %v1302, %v1334
    %v1351 = vadd.f32 %v1303, %v1335
    %v1352 = vadd.f32 %v1304, %v1336
    %vm1369 = vcmask 1046528
    %v1370 = vrot.slane %v1337, 1
    %v1371 = vrot.slane %v1341, 1
    %v1372 = vsel %vm1369, %v1370, %v1371
    %v1373 = vrot.slane %v1338, 1
    %v1374 = vrot.slane %v1342, 1
    %v1375 = vsel %vm1369, %v1373, %v1374
    %v1376 = vrot.slane %v1339, 1
    %v1377 = vrot.slane %v1343, 1
    %v1378 = vsel %vm1369, %v1376, %v1377
    %v1379 = vrot.slane %v1340, 1
    %v1380 = vrot.slane %v1344, 1
    %v1381 = vsel %vm1369, %v1379, %v1380
    %v1382 = vrot.slane %v1345, 1
    %v1383 = vrot.slane %v1349, 1
    %v1384 = vsel %vm1369, %v1382, %v1383
    %v1385 = vrot.slane %v1346, 1
    %v1386 = vrot.slane %v1350, 1
    %v1387 = vsel %vm1369, %v1385, %v1386
    %v1388 = vrot.slane %v1347, 1
    %v1389 = vrot.slane %v1351, 1
    %v1390 = vsel %vm1369, %v1388, %v1389
    %v1391 = vrot.slane %v1348, 1
    %v1392 = vrot.slane %v1352, 1
    %v1393 = vsel %vm1369, %v1391, %v1392
    %v1410 = vsel %vm1369, %v1371, 0.0
    %v1411 = vsel %vm1369, %v1374, 0.0
    %v1412 = vsel %vm1369, %v1377, 0.0
    %v1413 = vsel %vm1369, %v1380, 0.0
    %v1414 = vsel %vm1369, %v1383, 0.0
    %v1415 = vsel %vm1369, %v1386, 0.0
    %v1416 = vsel %vm1369, %v1389, 0.0
    %v1417 = vsel %vm1369, %v1392, 0.0
    %v1418 = vadd.f32 %v1209, %v1372
    %v1419 = vadd.f32 %v1210, %v1375
    %v1420 = vadd.f32 %v1211, %v1378
    %v1421 = vadd.f32 %v1212, %v1381
    %v1422 = vadd.f32 %v1213, %v1410
    %v1423 = vadd.f32 %v1214, %v1411
    %v1424 = vadd.f32 %v1215, %v1412
    %v1425 = vadd.f32 %v1216, %v1413
    %v1426 = vadd.f32 %v1217, %v1384
    %v1427 = vadd.f32 %v1218, %v1387
    %v1428 = vadd.f32 %v1219, %v1390
    %v1429 = vadd.f32 %v1220, %v1393
    %v1430 = vadd.f32 %v1221, %v1414
    %v1431 = vadd.f32 %v1222, %v1415
    %v1432 = vadd.f32 %v1223, %v1416
    %v1433 = vadd.f32 %v1224, %v1417
    %v1434 = vadd.f32 %v1418, 3.0
    %v1435 = vadd.f32 %v1419, 3.0
    %v1436 = vadd.f32 %v1420, 3.0
    %v1437 = vadd.f32 %v1421, 3.0
    %v1438 = vadd.f32 %v1422, 3.0
    %v1439 = vadd.f32 %v1423, 3.0
    %v1440 = vadd.f32 %v1424, 3.0
    %v1441 = vadd.f32 %v1425, 3.0
    %v1442 = vadd.f32 %v1426, 3.0
    %v1443 = vadd.f32 %v1427, 3.0
    %v1444 = vadd.f32 %v1428, 3.0
    %v1445 = vadd.f32 %v1429, 3.0
    %v1446 = vadd.f32 %v1430, 3.0
    %v1447 = vadd.f32 %v1431, 3.0
    %v1448 = vadd.f32 %v1432, 3.0
    %v1449 = vadd.f32 %v1433, 3.0
    %v1450 = vmax.f32 %v1434, 0.0
    %v1451 = vmax.f32 %v1435, 0.0
    %v1452 = vmax.f32 %v1436, 0.0
    %v1453 = vmax.f32 %v1437, 0.0
    %v1454 = vmax.f32 %v1438, 0.0
    %v1455 = vmax.f32 %v1439, 0.0
    %v1456 = vmax.f32 %v1440, 0.0
    %v1457 = vmax.f32 %v1441, 0.0
    %v1458 = vmax.f32 %v1442, 0.0
    %v1459 = vmax.f32 %v1443, 0.0
    %v1460 = vmax.f32 %v1444, 0.0
    %v1461 = vmax.f32 %v1445, 0.0
    %v1462 = vmax.f32 %v1446, 0.0
    %v1463 = vmax.f32 %v1447, 0.0
    %v1464 = vmax.f32 %v1448, 0.0
    %v1465 = vmax.f32 %v1449, 0.0
    %v1466 = vmin.f32 %v1450, 6.0
    %v1467 = vmin.f32 %v1451, 6.0
    %v1468 = vmin.f32 %v1452, 6.0
    %v1469 = vmin.f32 %v1453, 6.0
    %v1470 = vmin.f32 %v1454, 6.0
    %v1471 = vmin.f32 %v1455, 6.0
    %v1472 = vmin.f32 %v1456, 6.0
    %v1473 = vmin.f32 %v1457, 6.0
    %v1474 = vmin.f32 %v1458, 6.0
    %v1475 = vmin.f32 %v1459, 6.0
    %v1476 = vmin.f32 %v1460, 6.0
    %v1477 = vmin.f32 %v1461, 6.0
    %v1478 = vmin.f32 %v1462, 6.0
    %v1479 = vmin.f32 %v1463, 6.0
    %v1480 = vmin.f32 %v1464, 6.0
    %v1481 = vmin.f32 %v1465, 6.0
    %v1482 = vmul.f32 %v1418, %v1466
    %v1483 = vmul.f32 %v1419, %v1467
    %v1484 = vmul.f32 %v1420, %v1468
    %v1485 = vmul.f32 %v1421, %v1469
    %v1486 = vmul.f32 %v1422, %v1470
    %v1487 = vmul.f32 %v1423, %v1471
    %v1488 = vmul.f32 %v1424, %v1472
    %v1489 = vmul.f32 %v1425, %v1473
    %v1490 = vmul.f32 %v1426, %v1474
    %v1491 = vmul.f32 %v1427, %v1475
    %v1492 = vmul.f32 %v1428, %v1476
    %v1493 = vmul.f32 %v1429, %v1477
    %v1494 = vmul.f32 %v1430, %v1478
    %v1495 = vmul.f32 %v1431, %v1479
    %v1496 = vmul.f32 %v1432, %v1480
    %v1497 = vmul.f32 %v1433, %v1481
    %v1498 = vmul.f32 %v1482, 0.16666667
    %v1499 = vmul.f32 %v1483, 0.16666667
    %v1500 = vmul.f32 %v1484, 0.16666667
    %v1501 = vmul.f32 %v1485, 0.16666667
    %v1502 = vmul.f32 %v1486, 0.16666667
    %v1503 = vmul.f32 %v1487, 0.16666667
    %v1504 = vmul.f32 %v1488, 0.16666667
    %v1505 = vmul.f32 %v1489, 0.16666667
    %v1506 = vmul.f32 %v1490, 0.16666667
    %v1507 = vmul.f32 %v1491, 0.16666667
    %v1508 = vmul.f32 %v1492, 0.16666667
    %v1509 = vmul.f32 %v1493, 0.16666667
    %v1510 = vmul.f32 %v1494, 0.16666667
    %v1511 = vmul.f32 %v1495, 0.16666667
    %v1512 = vmul.f32 %v1496, 0.16666667
    %v1513 = vmul.f32 %v1497, 0.16666667
    %v1514 = vadd.f32 %v1498, %v1502
    %v1515 = vrot.slane %v1514, 4
    %v1516 = vadd.f32 %v1514, %v1515
    %v1517 = vrot.slane %v1516, 2
    %v1518 = vadd.f32 %v1516, %v1517
    %v1519 = vrot.slane %v1518, 1
    %v1520 = vadd.f32 %v1518, %v1519
    %v1521 = vadd.f32 %v1499, %v1503
    %v1522 = vrot.slane %v1521, 4
    %v1523 = vadd.f32 %v1521, %v1522
    %v1524 = vrot.slane %v1523, 2
    %v1525 = vadd.f32 %v1523, %v1524
    %v1526 = vrot.slane %v1525, 1
    %v1527 = vadd.f32 %v1525, %v1526
    %v1528 = vadd.f32 %v1500, %v1504
    %v1529 = vrot.slane %v1528, 4
    %v1530 = vadd.f32 %v1528, %v1529
    %v1531 = vrot.slane %v1530, 2
    %v1532 = vadd.f32 %v1530, %v1531
    %v1533 = vrot.slane %v1532, 1
    %v1534 = vadd.f32 %v1532, %v1533
    %v1535 = vadd.f32 %v1501, %v1505
    %v1536 = vrot.slane %v1535, 4
    %v1537 = vadd.f32 %v1535, %v1536
    %v1538 = vrot.slane %v1537, 2
    %v1539 = vadd.f32 %v1537, %v1538
    %v1540 = vrot.slane %v1539, 1
    %v1541 = vadd.f32 %v1539, %v1540
    %v1542 = vadd.f32 %v1506, %v1510
    %v1543 = vrot.slane %v1542, 4
    %v1544 = vadd.f32 %v1542, %v1543
    %v1545 = vrot.slane %v1544, 2
    %v1546 = vadd.f32 %v1544, %v1545
    %v1547 = vrot.slane %v1546, 1
    %v1548 = vadd.f32 %v1546, %v1547
    %v1549 = vadd.f32 %v1507, %v1511
    %v1550 = vrot.slane %v1549, 4
    %v1551 = vadd.f32 %v1549, %v1550
    %v1552 = vrot.slane %v1551, 2
    %v1553 = vadd.f32 %v1551, %v1552
    %v1554 = vrot.slane %v1553, 1
    %v1555 = vadd.f32 %v1553, %v1554
    %v1556 = vadd.f32 %v1508, %v1512
    %v1557 = vrot.slane %v1556, 4
    %v1558 = vadd.f32 %v1556, %v1557
    %v1559 = vrot.slane %v1558, 2
    %v1560 = vadd.f32 %v1558, %v1559
    %v1561 = vrot.slane %v1560, 1
    %v1562 = vadd.f32 %v1560, %v1561
    %v1563 = vadd.f32 %v1509, %v1513
    %v1564 = vrot.slane %v1563, 4
    %v1565 = vadd.f32 %v1563, %v1564
    %v1566 = vrot.slane %v1565, 2
    %v1567 = vadd.f32 %v1565, %v1566
    %v1568 = vrot.slane %v1567, 1
    %v1569 = vadd.f32 %v1567, %v1568
    %v1570 = vld [vmem:[%s5] sm:$0xff]
    %v1571 = vld [vmem:[%s5 + $0x8] sm:$0xff]
    %v1572 = vld [vmem:[%s5 + $0x10] sm:$0xff]
    %v1573 = vld [vmem:[%s5 + $0x18] sm:$0xff]
    %v1574 = vld [vmem:[%s5 + $0x20] sm:$0xff]
    %v1575 = vld [vmem:[%s5 + $0x28] sm:$0xff]
    %v1576 = vld [vmem:[%s5 + $0x30] sm:$0xff]
    %v1577 = vld [vmem:[%s5 + $0x38] sm:$0xff]
    %v1578 = vld [vmem:[%s5 + $0x40] sm:$0xff]
    %v1579 = vld [vmem:[%s5 + $0x48] sm:$0xff]
    %v1580 = vld [vmem:[%s5 + $0x50] sm:$0xff]
    %v1581 = vld [vmem:[%s5 + $0x58] sm:$0xff]
    %v1582 = vld [vmem:[%s5 + $0x60] sm:$0xff]
    %v1583 = vld [vmem:[%s5 + $0x68] sm:$0xff]
    %v1584 = vld [vmem:[%s5 + $0x70] sm:$0xff]
    %v1585 = vld [vmem:[%s5 + $0x78] sm:$0xff]
    %v1586 = vld [vmem:[%s5 + $0x80] sm:$0xff]
    %v1587 = vld [vmem:[%s5 + $0x88] sm:$0xff]
    %v1588 = vld [vmem:[%s5 + $0x90] sm:$0xff]
    %v1589 = vld [vmem:[%s5 + $0x98] sm:$0xff]
    %v1590 = vld [vmem:[%s5 + $0xa0] sm:$0xff]
    %v1591 = vld [vmem:[%s5 + $0xa8] sm:$0xff]
    %v1592 = vld [vmem:[%s5 + $0xb0] sm:$0xff]
    %v1593 = vld [vmem:[%s5 + $0xb8] sm:$0xff]
    %v1594 = vld [vmem:[%s5 + $0xc0] sm:$0xff]
    %v1595 = vld [vmem:[%s5 + $0xc8] sm:$0xff]
    %v1596 = vld [vmem:[%s5 + $0xd0] sm:$0xff]
    %v1597 = vld [vmem:[%s5 + $0xd8] sm:$0xff]
    %v1598 = vld [vmem:[%s5 + $0xe0] sm:$0xff]
    %v1599 = vld [vmem:[%s5 + $0xe8] sm:$0xff]
    %v1600 = vld [vmem:[%s5 + $0xf0] sm:$0xff]
    %v1601 = vld [vmem:[%s5 + $0xf8] sm:$0xff]
    %v1602 = vld [vmem:[%s5 + $0x100] sm:$0xff]
    %v1603 = vld [vmem:[%s5 + $0x108] sm:$0xff]
    %v1604 = vld [vmem:[%s5 + $0x110] sm:$0xff]
    %v1605 = vld [vmem:[%s5 + $0x118] sm:$0xff]
    %v1606 = vld [vmem:[%s5 + $0x120] sm:$0xff]
    %v1607 = vld [vmem:[%s5 + $0x128] sm:$0xff]
    %v1608 = vld [vmem:[%s5 + $0x130] sm:$0xff]
    %v1609 = vld [vmem:[%s5 + $0x138] sm:$0xff]
    %v1610 = vld [vmem:[%s5 + $0x140] sm:$0xff]
    %v1611 = vld [vmem:[%s5 + $0x148] sm:$0xff]
    %v1612 = vld [vmem:[%s5 + $0x150] sm:$0xff]
    %v1613 = vld [vmem:[%s5 + $0x158] sm:$0xff]
    %v1614 = vld [vmem:[%s5 + $0x160] sm:$0xff]
    %v1615 = vld [vmem:[%s5 + $0x168] sm:$0xff]
    %v1616 = vld [vmem:[%s5 + $0x170] sm:$0xff]
    %v1617 = vld [vmem:[%s5 + $0x178] sm:$0xff]
    %v1618 = vld [vmem:[%s5 + $0x180] sm:$0xff]
    %v1619 = vld [vmem:[%s5 + $0x188] sm:$0xff]
    %v1620 = vld [vmem:[%s5 + $0x190] sm:$0xff]
    %v1621 = vld [vmem:[%s5 + $0x198] sm:$0xff]
    %v1622 = vld [vmem:[%s5 + $0x1a0] sm:$0xff]
    %v1623 = vld [vmem:[%s5 + $0x1a8] sm:$0xff]
    %v1624 = vld [vmem:[%s5 + $0x1b0] sm:$0xff]
    %v1625 = vld [vmem:[%s5 + $0x1b8] sm:$0xff]
    %v1626 = vld [vmem:[%s5 + $0x1c0] sm:$0xff]
    %v1627 = vld [vmem:[%s5 + $0x1c8] sm:$0xff]
    %v1628 = vld [vmem:[%s5 + $0x1d0] sm:$0xff]
    %v1629 = vld [vmem:[%s5 + $0x1d8] sm:$0xff]
    %v1630 = vld [vmem:[%s5 + $0x1e0] sm:$0xff]
    %v1631 = vld [vmem:[%s5 + $0x1e8] sm:$0xff]
    %v1632 = vld [vmem:[%s5 + $0x1f0] sm:$0xff]
    %v1633 = vld [vmem:[%s5 + $0x1f8] sm:$0xff]
    %v1634 = vld [vmem:[%s6] sm:$0x1]
    %v1636 = vlaneseq
    %v1637 = vshrl.u32 %v1636, 7
    %v1638 = vsub.s32 0, %v1637
    %v1639 = vrot.slane %v1634, %v1638
    %vm1649 = vcmask 1041409
    %v1650 = vsel %vm1649, %v1548, %v1520
    %v1651 = vsel %vm1649, %v1555, %v1527
    %v1652 = vsel %vm1649, %v1562, %v1534
    %v1653 = vsel %vm1649, %v1569, %v1541
    %1658 = vmatprep.subr.mxu0 0.0
    %1659 = vmatpush1.msra.mxu0 %v1585
    %1660 = vmatprep.subr.mxu0 0.0
    %1661 = vmatpush1.msra.mxu0 %v1584
    %1662 = vmatprep.subr.mxu0 0.0
    %1663 = vmatpush1.msra.mxu0 %v1583
    %1664 = vmatprep.subr.mxu0 0.0
    %1665 = vmatpush1.msra.mxu0 %v1582
    %1666 = vmatprep.subr.mxu0 0.0
    %1667 = vmatpush1.msra.mxu0 %v1581
    %1668 = vmatprep.subr.mxu0 0.0
    %1669 = vmatpush1.msra.mxu0 %v1580
    %1670 = vmatprep.subr.mxu0 0.0
    %1671 = vmatpush1.msra.mxu0 %v1579
    %1672 = vmatprep.subr.mxu0 0.0
    %1673 = vmatpush1.msra.mxu0 %v1578
    %1674 = vmatprep.subr.mxu0 0.0
    %1675 = vmatpush1.msra.mxu0 %v1577
    %1676 = vmatprep.subr.mxu0 0.0
    %1677 = vmatpush1.msra.mxu0 %v1576
    %1678 = vmatprep.subr.mxu0 0.0
    %1679 = vmatpush1.msra.mxu0 %v1575
    %1680 = vmatprep.subr.mxu0 0.0
    %1681 = vmatpush1.msra.mxu0 %v1574
    %1682 = vmatprep.subr.mxu0 0.0
    %1683 = vmatpush1.msra.mxu0 %v1573
    %1684 = vmatprep.subr.mxu0 0.0
    %1685 = vmatpush1.msra.mxu0 %v1572
    %1686 = vmatprep.subr.mxu0 0.0
    %1687 = vmatpush1.msra.mxu0 %v1571
    %1688 = vmatprep.subr.mxu0 0.0
    %1689 = vmatpush1.msra.mxu0 %v1570
    %1690 = vmatprep.subr.mxu0 0.0
    %1691 = vmatpush2.msra.mxu0 %v1601
    %1692 = vmatprep.subr.mxu0 0.0
    %1693 = vmatpush2.msra.mxu0 %v1600
    %1694 = vmatprep.subr.mxu0 0.0
    %1695 = vmatpush2.msra.mxu0 %v1599
    %1696 = vmatprep.subr.mxu0 0.0
    %1697 = vmatpush2.msra.mxu0 %v1598
    %1698 = vmatprep.subr.mxu0 0.0
    %1699 = vmatpush2.msra.mxu0 %v1597
    %1700 = vmatprep.subr.mxu0 0.0
    %1701 = vmatpush2.msra.mxu0 %v1596
    %1702 = vmatprep.subr.mxu0 0.0
    %1703 = vmatpush2.msra.mxu0 %v1595
    %1704 = vmatprep.subr.mxu0 0.0
    %1705 = vmatpush2.msra.mxu0 %v1594
    %1706 = vmatprep.subr.mxu0 0.0
    %1707 = vmatpush2.msra.mxu0 %v1593
    %1708 = vmatprep.subr.mxu0 0.0
    %1709 = vmatpush2.msra.mxu0 %v1592
    %1710 = vmatprep.subr.mxu0 0.0
    %1711 = vmatpush2.msra.mxu0 %v1591
    %1712 = vmatprep.subr.mxu0 0.0
    %1713 = vmatpush2.msra.mxu0 %v1590
    %1714 = vmatprep.subr.mxu0 0.0
    %1715 = vmatpush2.msra.mxu0 %v1589
    %1716 = vmatprep.subr.mxu0 0.0
    %1717 = vmatpush2.msra.mxu0 %v1588
    %1718 = vmatprep.subr.mxu0 0.0
    %1719 = vmatpush2.msra.mxu0 %v1587
    %1720 = vmatprep.subr.mxu0 0.0
    %1721 = vmatpush2.msra.mxu0 %v1586
    %1722 = vmatprep.mubr.f32.mxu0 %v1651
    %1723 = vmatmul.mubr.f32.gmra.mxu0 %v1650
    %v1724 = vpop.f32.mrf.mxu0
    %v1725 = vadd.f32 %v1639, %v1724
    %v1726 = vpop.f32.mrf.mxu0
    %1727 = vdwg.mxu0
    %1728 = vmatprep.subr.mxu0 0.0
    %1729 = vmatpush1.msra.mxu0 %v1617
    %1730 = vmatprep.subr.mxu0 0.0
    %1731 = vmatpush1.msra.mxu0 %v1616
    %1732 = vmatprep.subr.mxu0 0.0
    %1733 = vmatpush1.msra.mxu0 %v1615
    %1734 = vmatprep.subr.mxu0 0.0
    %1735 = vmatpush1.msra.mxu0 %v1614
    %1736 = vmatprep.subr.mxu0 0.0
    %1737 = vmatpush1.msra.mxu0 %v1613
    %1738 = vmatprep.subr.mxu0 0.0
    %1739 = vmatpush1.msra.mxu0 %v1612
    %1740 = vmatprep.subr.mxu0 0.0
    %1741 = vmatpush1.msra.mxu0 %v1611
    %1742 = vmatprep.subr.mxu0 0.0
    %1743 = vmatpush1.msra.mxu0 %v1610
    %1744 = vmatprep.subr.mxu0 0.0
    %1745 = vmatpush1.msra.mxu0 %v1609
    %1746 = vmatprep.subr.mxu0 0.0
    %1747 = vmatpush1.msra.mxu0 %v1608
    %1748 = vmatprep.subr.mxu0 0.0
    %1749 = vmatpush1.msra.mxu0 %v1607
    %1750 = vmatprep.subr.mxu0 0.0
    %1751 = vmatpush1.msra.mxu0 %v1606
    %1752 = vmatprep.subr.mxu0 0.0
    %1753 = vmatpush1.msra.mxu0 %v1605
    %1754 = vmatprep.subr.mxu0 0.0
    %1755 = vmatpush1.msra.mxu0 %v1604
    %1756 = vmatprep.subr.mxu0 0.0
    %1757 = vmatpush1.msra.mxu0 %v1603
    %1758 = vmatprep.subr.mxu0 0.0
    %1759 = vmatpush1.msra.mxu0 %v1602
    %1760 = vmatprep.subr.mxu0 0.0
    %1761 = vmatpush2.msra.mxu0 %v1633
    %1762 = vmatprep.subr.mxu0 0.0
    %1763 = vmatpush2.msra.mxu0 %v1632
    %1764 = vmatprep.subr.mxu0 0.0
    %1765 = vmatpush2.msra.mxu0 %v1631
    %1766 = vmatprep.subr.mxu0 0.0
    %1767 = vmatpush2.msra.mxu0 %v1630
    %1768 = vmatprep.subr.mxu0 0.0
    %1769 = vmatpush2.msra.mxu0 %v1629
    %1770 = vmatprep.subr.mxu0 0.0
    %1771 = vmatpush2.msra.mxu0 %v1628
    %1772 = vmatprep.subr.mxu0 0.0
    %1773 = vmatpush2.msra.mxu0 %v1627
    %1774 = vmatprep.subr.mxu0 0.0
    %1775 = vmatpush2.msra.mxu0 %v1626
    %1776 = vmatprep.subr.mxu0 0.0
    %1777 = vmatpush2.msra.mxu0 %v1625
    %1778 = vmatprep.subr.mxu0 0.0
    %1779 = vmatpush2.msra.mxu0 %v1624
    %1780 = vmatprep.subr.mxu0 0.0
    %1781 = vmatpush2.msra.mxu0 %v1623
    %1782 = vmatprep.subr.mxu0 0.0
    %1783 = vmatpush2.msra.mxu0 %v1622
    %1784 = vmatprep.subr.mxu0 0.0
    %1785 = vmatpush2.msra.mxu0 %v1621
    %1786 = vmatprep.subr.mxu0 0.0
    %1787 = vmatpush2.msra.mxu0 %v1620
    %1788 = vmatprep.subr.mxu0 0.0
    %1789 = vmatpush2.msra.mxu0 %v1619
    %1790 = vmatprep.subr.mxu0 0.0
    %1791 = vmatpush2.msra.mxu0 %v1618
    %1792 = vmatprep.mubr.f32.mxu0 %v1653
    %1793 = vmatmul.mubr.f32.gmra.mxu0 %v1652
    %v1794 = vpop.f32.mrf.mxu0
    %v1795 = vadd.f32 %v1725, %v1794
    %v1796 = vpop.f32.mrf.mxu0
    %1797 = vdwg.mxu0
    %v1798 = vmax.f32 %v1795, 0.0
    %v1799 = vld [vmem:[%s7] sm:$0xff]
    %v1800 = vld [vmem:[%s7 + $0x8] sm:$0xff]
    %v1801 = vld [vmem:[%s7 + $0x10] sm:$0xff]
    %v1802 = vld [vmem:[%s7 + $0x18] sm:$0xff]
    %v1803 = vld [vmem:[%s8] sm:$0xf]
    %v1805 = vlaneseq
    %v1806 = vshrl.u32 %v1805, 7
    %v1807 = vsub.s32 0, %v1806
    %v1808 = vrot.slane %v1803, %v1807
    %v1809 = vlaneseq
    %v1810 = vshrl.u32 %v1809, 7
    %v1811 = vsub.s32 1, %v1810
    %v1812 = vrot.slane %v1803, %v1811
    %v1813 = vlaneseq
    %v1814 = vshrl.u32 %v1813, 7
    %v1815 = vsub.s32 2, %v1814
    %v1816 = vrot.slane %v1803, %v1815
    %v1817 = vlaneseq
    %v1818 = vshrl.u32 %v1817, 7
    %v1819 = vsub.s32 3, %v1818
    %v1820 = vrot.slane %v1803, %v1819
    %vm1825 = vcmask 64512
    %v1827 = vsel %vm1825, %v1798, 0
    %1829 = vmatprep.subr.mxu0 0.0
    %1830 = vmatpush1.msra.mxu0 0.0
    %1831 = vmatprep.subr.mxu0 0.0
    %1832 = vmatpush1.msra.mxu0 0.0
    %1833 = vmatprep.subr.mxu0 0.0
    %1834 = vmatpush1.msra.mxu0 0.0
    %1835 = vmatprep.subr.mxu0 0.0
    %1836 = vmatpush1.msra.mxu0 0.0
    %1837 = vmatprep.subr.mxu0 0.0
    %1838 = vmatpush1.msra.mxu0 0.0
    %1839 = vmatprep.subr.mxu0 0.0
    %1840 = vmatpush1.msra.mxu0 0.0
    %1841 = vmatprep.subr.mxu0 0.0
    %1842 = vmatpush1.msra.mxu0 0.0
    %1843 = vmatprep.subr.mxu0 0.0
    %1844 = vmatpush1.msra.mxu0 0.0
    %1845 = vmatprep.subr.mxu0 0.0
    %1846 = vmatpush1.msra.mxu0 0.0
    %1847 = vmatprep.subr.mxu0 0.0
    %1848 = vmatpush1.msra.mxu0 0.0
    %1849 = vmatprep.subr.mxu0 0.0
    %1850 = vmatpush1.msra.mxu0 0.0
    %1851 = vmatprep.subr.mxu0 0.0
    %1852 = vmatpush1.msra.mxu0 0.0
    %1853 = vmatprep.subr.mxu0 0.0
    %1854 = vmatpush1.msra.mxu0 0.0
    %1855 = vmatprep.subr.mxu0 0.0
    %1856 = vmatpush1.msra.mxu0 0.0
    %1857 = vmatprep.subr.mxu0 0.0
    %1858 = vmatpush1.msra.mxu0 0.0
    %1859 = vmatprep.subr.mxu0 %v1800
    %1860 = vmatpush1.msra.mxu0 %v1799
    %1861 = vmatprep.subr.mxu0 0.0
    %1862 = vmatpush2.msra.mxu0 0.0
    %1863 = vmatprep.subr.mxu0 0.0
    %1864 = vmatpush2.msra.mxu0 0.0
    %1865 = vmatprep.subr.mxu0 0.0
    %1866 = vmatpush2.msra.mxu0 0.0
    %1867 = vmatprep.subr.mxu0 0.0
    %1868 = vmatpush2.msra.mxu0 0.0
    %1869 = vmatprep.subr.mxu0 0.0
    %1870 = vmatpush2.msra.mxu0 0.0
    %1871 = vmatprep.subr.mxu0 0.0
    %1872 = vmatpush2.msra.mxu0 0.0
    %1873 = vmatprep.subr.mxu0 0.0
    %1874 = vmatpush2.msra.mxu0 0.0
    %1875 = vmatprep.subr.mxu0 0.0
    %1876 = vmatpush2.msra.mxu0 0.0
    %1877 = vmatprep.subr.mxu0 0.0
    %1878 = vmatpush2.msra.mxu0 0.0
    %1879 = vmatprep.subr.mxu0 0.0
    %1880 = vmatpush2.msra.mxu0 0.0
    %1881 = vmatprep.subr.mxu0 0.0
    %1882 = vmatpush2.msra.mxu0 0.0
    %1883 = vmatprep.subr.mxu0 0.0
    %1884 = vmatpush2.msra.mxu0 0.0
    %1885 = vmatprep.subr.mxu0 0.0
    %1886 = vmatpush2.msra.mxu0 0.0
    %1887 = vmatprep.subr.mxu0 0.0
    %1888 = vmatpush2.msra.mxu0 0.0
    %1889 = vmatprep.subr.mxu0 0.0
    %1890 = vmatpush2.msra.mxu0 0.0
    %1891 = vmatprep.subr.mxu0 0.0
    %1892 = vmatpush2.msra.mxu0 0.0
    %1893 = vmatprep.mubr.f32.mxu0 0.0
    %1894 = vmatmul.mubr.f32.gmra.mxu0 %v1827
    %v1895 = vpop.f32.mrf.mxu0
    %v1896 = vadd.f32 %v1808, %v1895
    %v1897 = vpop.f32.mrf.mxu0
    %v1898 = vadd.f32 %v1812, %v1897
    %1899 = vdwg.mxu0
    %1900 = vmatprep.subr.mxu0 0.0
    %1901 = vmatpush1.msra.mxu0 0.0
    %1902 = vmatprep.subr.mxu0 0.0
    %1903 = vmatpush1.msra.mxu0 0.0
    %1904 = vmatprep.subr.mxu0 0.0
    %1905 = vmatpush1.msra.mxu0 0.0
    %1906 = vmatprep.subr.mxu0 0.0
    %1907 = vmatpush1.msra.mxu0 0.0
    %1908 = vmatprep.subr.mxu0 0.0
    %1909 = vmatpush1.msra.mxu0 0.0
    %1910 = vmatprep.subr.mxu0 0.0
    %1911 = vmatpush1.msra.mxu0 0.0
    %1912 = vmatprep.subr.mxu0 0.0
    %1913 = vmatpush1.msra.mxu0 0.0
    %1914 = vmatprep.subr.mxu0 0.0
    %1915 = vmatpush1.msra.mxu0 0.0
    %1916 = vmatprep.subr.mxu0 0.0
    %1917 = vmatpush1.msra.mxu0 0.0
    %1918 = vmatprep.subr.mxu0 0.0
    %1919 = vmatpush1.msra.mxu0 0.0
    %1920 = vmatprep.subr.mxu0 0.0
    %1921 = vmatpush1.msra.mxu0 0.0
    %1922 = vmatprep.subr.mxu0 0.0
    %1923 = vmatpush1.msra.mxu0 0.0
    %1924 = vmatprep.subr.mxu0 0.0
    %1925 = vmatpush1.msra.mxu0 0.0
    %1926 = vmatprep.subr.mxu0 0.0
    %1927 = vmatpush1.msra.mxu0 0.0
    %1928 = vmatprep.subr.mxu0 0.0
    %1929 = vmatpush1.msra.mxu0 0.0
    %1930 = vmatprep.subr.mxu0 %v1802
    %1931 = vmatpush1.msra.mxu0 %v1801
    %1932 = vmatprep.subr.mxu0 0.0
    %1933 = vmatpush2.msra.mxu0 0.0
    %1934 = vmatprep.subr.mxu0 0.0
    %1935 = vmatpush2.msra.mxu0 0.0
    %1936 = vmatprep.subr.mxu0 0.0
    %1937 = vmatpush2.msra.mxu0 0.0
    %1938 = vmatprep.subr.mxu0 0.0
    %1939 = vmatpush2.msra.mxu0 0.0
    %1940 = vmatprep.subr.mxu0 0.0
    %1941 = vmatpush2.msra.mxu0 0.0
    %1942 = vmatprep.subr.mxu0 0.0
    %1943 = vmatpush2.msra.mxu0 0.0
    %1944 = vmatprep.subr.mxu0 0.0
    %1945 = vmatpush2.msra.mxu0 0.0
    %1946 = vmatprep.subr.mxu0 0.0
    %1947 = vmatpush2.msra.mxu0 0.0
    %1948 = vmatprep.subr.mxu0 0.0
    %1949 = vmatpush2.msra.mxu0 0.0
    %1950 = vmatprep.subr.mxu0 0.0
    %1951 = vmatpush2.msra.mxu0 0.0
    %1952 = vmatprep.subr.mxu0 0.0
    %1953 = vmatpush2.msra.mxu0 0.0
    %1954 = vmatprep.subr.mxu0 0.0
    %1955 = vmatpush2.msra.mxu0 0.0
    %1956 = vmatprep.subr.mxu0 0.0
    %1957 = vmatpush2.msra.mxu0 0.0
    %1958 = vmatprep.subr.mxu0 0.0
    %1959 = vmatpush2.msra.mxu0 0.0
    %1960 = vmatprep.subr.mxu0 0.0
    %1961 = vmatpush2.msra.mxu0 0.0
    %1962 = vmatprep.subr.mxu0 0.0
    %1963 = vmatpush2.msra.mxu0 0.0
    %1964 = vmatprep.mubr.f32.mxu0 0.0
    %1965 = vmatmul.mubr.f32.gmra.mxu0 %v1827
    %v1966 = vpop.f32.mrf.mxu0
    %v1967 = vadd.f32 %v1816, %v1966
    %v1968 = vpop.f32.mrf.mxu0
    %v1969 = vadd.f32 %v1820, %v1968
    %1970 = vdwg.mxu0
    %v1971 = vadd.f32 %v1896, 3.0
    %v1972 = vadd.f32 %v1898, 3.0
    %v1973 = vadd.f32 %v1967, 3.0
    %v1974 = vadd.f32 %v1969, 3.0
    %v1975 = vmax.f32 %v1971, 0.0
    %v1976 = vmax.f32 %v1972, 0.0
    %v1977 = vmax.f32 %v1973, 0.0
    %v1978 = vmax.f32 %v1974, 0.0
    %v1979 = vmin.f32 %v1975, 6.0
    %v1980 = vmin.f32 %v1976, 6.0
    %v1981 = vmin.f32 %v1977, 6.0
    %v1982 = vmin.f32 %v1978, 6.0
    %v1983 = vmul.f32 %v1979, 0.16666667
    %v1984 = vmul.f32 %v1980, 0.16666667
    %v1985 = vmul.f32 %v1981, 0.16666667
    %v1986 = vmul.f32 %v1982, 0.16666667
    %v1991 = vcombine.low %v1983, %v1984
    %v1992 = vcombine.low %v1985, %v1986
    %v1994 = vunpack.c.l.s4 1966171168
    %v1995 = vunpack.c.0.s8 %v1994
    %v1996 = vlaneseq
    %v1997 = vshrl.u32 %v1996, 7
    %v1998 = vsub.s32 %v1995, %v1997
    %v1999 = vrot.slane %v1991, %v1998
    %v2001 = vunpack.c.l.s4 1966171168
    %v2002 = vunpack.c.0.s8 %v2001
    %v2003 = vlaneseq
    %v2004 = vshrl.u32 %v2003, 7
    %v2005 = vsub.s32 %v2002, %v2004
    %v2006 = vrot.slane %v1992, %v2005
    %v2007 = vcombine.low %v1999, %v2006
    %v2008 = vcombine.high %v1999, %v2006
    %v2010 = vunpack.c.l.s4 1966171168
    %v2011 = vunpack.c.0.s8 %v2010
    %v2012 = vlaneseq
    %v2013 = vshrl.u32 %v2012, 7
    %v2014 = vsub.s32 %v2011, %v2013
    %v2015 = vrot.slane %v2007, %v2014
    %v2017 = vunpack.c.l.s4 1966171168
    %v2018 = vunpack.c.0.s8 %v2017
    %v2019 = vlaneseq
    %v2020 = vshrl.u32 %v2019, 7
    %v2021 = vsub.s32 %v2018, %v2020
    %v2022 = vrot.slane %v2008, %v2021
    %v2023 = vlaneseq
    %v2024 = vshrl.u32 %v2023, 7
    %v2025 = vsub.s32 0, %v2024
    %v2026 = vrot.slane %v2015, %v2025
    %v2027 = vlaneseq
    %v2028 = vshrl.u32 %v2027, 7
    %v2029 = vsub.s32 1, %v2028
    %v2030 = vrot.slane %v2015, %v2029
    %v2031 = vlaneseq
    %v2032 = vshrl.u32 %v2031, 7
    %v2033 = vsub.s32 2, %v2032
    %v2034 = vrot.slane %v2015, %v2033
    %v2035 = vlaneseq
    %v2036 = vshrl.u32 %v2035, 7
    %v2037 = vsub.s32 3, %v2036
    %v2038 = vrot.slane %v2015, %v2037
    %v2039 = vlaneseq
    %v2040 = vshrl.u32 %v2039, 7
    %v2041 = vsub.s32 0, %v2040
    %v2042 = vrot.slane %v2022, %v2041
    %v2043 = vlaneseq
    %v2044 = vshrl.u32 %v2043, 7
    %v2045 = vsub.s32 1, %v2044
    %v2046 = vrot.slane %v2022, %v2045
    %v2047 = vlaneseq
    %v2048 = vshrl.u32 %v2047, 7
    %v2049 = vsub.s32 2, %v2048
    %v2050 = vrot.slane %v2022, %v2049
    %v2051 = vlaneseq
    %v2052 = vshrl.u32 %v2051, 7
    %v2053 = vsub.s32 3, %v2052
    %v2054 = vrot.slane %v2022, %v2053
    %v2063 = vmul.f32 %v1498, %v2026
    %v2064 = vmul.f32 %v1499, %v2030
    %v2065 = vmul.f32 %v1500, %v2034
    %v2066 = vmul.f32 %v1501, %v2038
    %v2067 = vmul.f32 %v1502, %v2026
    %v2068 = vmul.f32 %v1503, %v2030
    %v2069 = vmul.f32 %v1504, %v2034
    %v2070 = vmul.f32 %v1505, %v2038
    %v2071 = vmul.f32 %v1506, %v2042
    %v2072 = vmul.f32 %v1507, %v2046
    %v2073 = vmul.f32 %v1508, %v2050
    %v2074 = vmul.f32 %v1509, %v2054
    %v2075 = vmul.f32 %v1510, %v2042
    %v2076 = vmul.f32 %v1511, %v2046
    %v2077 = vmul.f32 %v1512, %v2050
    %v2078 = vmul.f32 %v1513, %v2054
    %v2079 = vpack.c.bf16 %v2067, %v2063
    %v2080 = vpack.c.bf16 %v2068, %v2064
    %v2081 = vpack.c.bf16 %v2069, %v2065
    %v2082 = vpack.c.bf16 %v2070, %v2066
    %v2083 = vpack.c.bf16 %v2075, %v2071
    %v2084 = vpack.c.bf16 %v2076, %v2072
    %v2085 = vpack.c.bf16 %v2077, %v2073
    %v2086 = vpack.c.bf16 %v2078, %v2074
    %v2087 = vld [vmem:[#allocation8] sm:$0xff]
    %v2088 = vld [vmem:[#allocation8 + $0x8] sm:$0xff]
    %v2089 = vld [vmem:[#allocation8 + $0x10] sm:$0xff]
    %v2090 = vld [vmem:[#allocation8 + $0x18] sm:$0xff]
    %v2091 = vld [vmem:[#allocation8 + $0x20] sm:$0xff]
    %v2092 = vld [vmem:[#allocation8 + $0x28] sm:$0xff]
    %v2093 = vld [vmem:[#allocation8 + $0x30] sm:$0xff]
    %v2094 = vld [vmem:[#allocation8 + $0x38] sm:$0xff]
    %v2095 = vld [vmem:[#allocation8 + $0x40] sm:$0xff]
    %v2096 = vld [vmem:[#allocation8 + $0x48] sm:$0xff]
    %v2097 = vld [vmem:[#allocation8 + $0x50] sm:$0xff]
    %v2098 = vld [vmem:[#allocation8 + $0x58] sm:$0xff]
    %v2099 = vld [vmem:[#allocation8 + $0x60] sm:$0xff]
    %v2100 = vld [vmem:[#allocation8 + $0x68] sm:$0xff]
    %v2101 = vld [vmem:[#allocation8 + $0x70] sm:$0xff]
    %v2102 = vld [vmem:[#allocation8 + $0x78] sm:$0xff]
    %v2103 = vld [vmem:[#allocation8 + $0x80] sm:$0xff]
    %v2104 = vld [vmem:[#allocation8 + $0x88] sm:$0xff]
    %v2105 = vld [vmem:[#allocation8 + $0x90] sm:$0xff]
    %v2106 = vld [vmem:[#allocation8 + $0x98] sm:$0xff]
    %v2107 = vld [vmem:[#allocation8 + $0xa0] sm:$0xff]
    %v2108 = vld [vmem:[#allocation8 + $0xa8] sm:$0xff]
    %v2109 = vld [vmem:[#allocation8 + $0xb0] sm:$0xff]
    %v2110 = vld [vmem:[#allocation8 + $0xb8] sm:$0xff]
    %v2111 = vld [vmem:[#allocation8 + $0xc0] sm:$0xff]
    %v2112 = vld [vmem:[#allocation8 + $0xc8] sm:$0xff]
    %v2113 = vld [vmem:[#allocation8 + $0xd0] sm:$0xff]
    %v2114 = vld [vmem:[#allocation8 + $0xd8] sm:$0xff]
    %v2115 = vld [vmem:[#allocation8 + $0xe0] sm:$0xff]
    %v2116 = vld [vmem:[#allocation8 + $0xe8] sm:$0xff]
    %v2117 = vld [vmem:[#allocation8 + $0xf0] sm:$0xff]
    %v2118 = vld [vmem:[#allocation8 + $0xf8] sm:$0xff]
    %v2119 = vld [vmem:[#allocation8 + $0x100] sm:$0xff]
    %v2120 = vld [vmem:[#allocation8 + $0x108] sm:$0xff]
    %v2121 = vld [vmem:[#allocation8 + $0x110] sm:$0xff]
    %v2122 = vld [vmem:[#allocation8 + $0x118] sm:$0xff]
    %v2123 = vld [vmem:[#allocation8 + $0x120] sm:$0xff]
    %v2124 = vld [vmem:[#allocation8 + $0x128] sm:$0xff]
    %v2125 = vld [vmem:[#allocation8 + $0x130] sm:$0xff]
    %v2126 = vld [vmem:[#allocation8 + $0x138] sm:$0xff]
    %v2127 = vld [vmem:[#allocation8 + $0x140] sm:$0xff]
    %v2128 = vld [vmem:[#allocation8 + $0x148] sm:$0xff]
    %v2129 = vld [vmem:[#allocation8 + $0x150] sm:$0xff]
    %v2130 = vld [vmem:[#allocation8 + $0x158] sm:$0xff]
    %v2131 = vld [vmem:[#allocation8 + $0x160] sm:$0xff]
    %v2132 = vld [vmem:[#allocation8 + $0x168] sm:$0xff]
    %v2133 = vld [vmem:[#allocation8 + $0x170] sm:$0xff]
    %v2134 = vld [vmem:[#allocation8 + $0x178] sm:$0xff]
    %v2135 = vld [vmem:[#allocation8 + $0x180] sm:$0xff]
    %v2136 = vld [vmem:[#allocation8 + $0x188] sm:$0xff]
    %v2137 = vld [vmem:[#allocation8 + $0x190] sm:$0xff]
    %v2138 = vld [vmem:[#allocation8 + $0x198] sm:$0xff]
    %v2139 = vld [vmem:[#allocation8 + $0x1a0] sm:$0xff]
    %v2140 = vld [vmem:[#allocation8 + $0x1a8] sm:$0xff]
    %v2141 = vld [vmem:[#allocation8 + $0x1b0] sm:$0xff]
    %v2142 = vld [vmem:[#allocation8 + $0x1b8] sm:$0xff]
    %v2143 = vld [vmem:[#allocation8 + $0x1c0] sm:$0xff]
    %v2144 = vld [vmem:[#allocation8 + $0x1c8] sm:$0xff]
    %v2145 = vld [vmem:[#allocation8 + $0x1d0] sm:$0xff]
    %v2146 = vld [vmem:[#allocation8 + $0x1d8] sm:$0xff]
    %v2147 = vld [vmem:[#allocation8 + $0x1e0] sm:$0xff]
    %v2148 = vld [vmem:[#allocation8 + $0x1e8] sm:$0xff]
    %v2149 = vld [vmem:[#allocation8 + $0x1f0] sm:$0xff]
    %v2150 = vld [vmem:[#allocation8 + $0x1f8] sm:$0xff]
    %v2151 = vld [vmem:[%s10] sm:$0x3]
    %v2153 = vlaneseq
    %v2154 = vshrl.u32 %v2153, 7
    %v2155 = vsub.s32 0, %v2154
    %v2156 = vrot.slane %v2151, %v2155
    %v2157 = vlaneseq
    %v2158 = vshrl.u32 %v2157, 7
    %v2159 = vsub.s32 1, %v2158
    %v2160 = vrot.slane %v2151, %v2159
    %v2227 = vunpack.c.l.b16 %v2087
    %v2228 = vunpack.c.h.b16 %v2087
    %v2229 = vunpack.c.l.b16 %v2088
    %v2230 = vunpack.c.h.b16 %v2088
    %v2231 = vunpack.c.l.b16 %v2089
    %v2232 = vunpack.c.h.b16 %v2089
    %v2233 = vunpack.c.l.b16 %v2090
    %v2234 = vunpack.c.h.b16 %v2090
    %v2235 = vunpack.c.l.b16 %v2091
    %v2236 = vunpack.c.h.b16 %v2091
    %v2237 = vunpack.c.l.b16 %v2092
    %v2238 = vunpack.c.h.b16 %v2092
    %v2239 = vunpack.c.l.b16 %v2093
    %v2240 = vunpack.c.h.b16 %v2093
    %v2241 = vunpack.c.l.b16 %v2094
    %v2242 = vunpack.c.h.b16 %v2094
    %v2243 = vunpack.c.l.b16 %v2095
    %v2244 = vunpack.c.h.b16 %v2095
    %v2245 = vunpack.c.l.b16 %v2096
    %v2246 = vunpack.c.h.b16 %v2096
    %v2247 = vunpack.c.l.b16 %v2097
    %v2248 = vunpack.c.h.b16 %v2097
    %v2249 = vunpack.c.l.b16 %v2098
    %v2250 = vunpack.c.h.b16 %v2098
    %v2251 = vunpack.c.l.b16 %v2099
    %v2252 = vunpack.c.h.b16 %v2099
    %v2253 = vunpack.c.l.b16 %v2100
    %v2254 = vunpack.c.h.b16 %v2100
    %v2255 = vunpack.c.l.b16 %v2101
    %v2256 = vunpack.c.h.b16 %v2101
    %v2257 = vunpack.c.l.b16 %v2102
    %v2258 = vunpack.c.h.b16 %v2102
    %v2259 = vunpack.c.l.b16 %v2103
    %v2260 = vunpack.c.h.b16 %v2103
    %v2261 = vunpack.c.l.b16 %v2104
    %v2262 = vunpack.c.h.b16 %v2104
    %v2263 = vunpack.c.l.b16 %v2105
    %v2264 = vunpack.c.h.b16 %v2105
    %v2265 = vunpack.c.l.b16 %v2106
    %v2266 = vunpack.c.h.b16 %v2106
    %v2267 = vunpack.c.l.b16 %v2107
    %v2268 = vunpack.c.h.b16 %v2107
    %v2269 = vunpack.c.l.b16 %v2108
    %v2270 = vunpack.c.h.b16 %v2108
    %v2271 = vunpack.c.l.b16 %v2109
    %v2272 = vunpack.c.h.b16 %v2109
    %v2273 = vunpack.c.l.b16 %v2110
    %v2274 = vunpack.c.h.b16 %v2110
    %v2275 = vunpack.c.l.b16 %v2111
    %v2276 = vunpack.c.h.b16 %v2111
    %v2277 = vunpack.c.l.b16 %v2112
    %v2278 = vunpack.c.h.b16 %v2112
    %v2279 = vunpack.c.l.b16 %v2113
    %v2280 = vunpack.c.h.b16 %v2113
    %v2281 = vunpack.c.l.b16 %v2114
    %v2282 = vunpack.c.h.b16 %v2114
    %v2283 = vunpack.c.l.b16 %v2115
    %v2284 = vunpack.c.h.b16 %v2115
    %v2285 = vunpack.c.l.b16 %v2116
    %v2286 = vunpack.c.h.b16 %v2116
    %v2287 = vunpack.c.l.b16 %v2117
    %v2288 = vunpack.c.h.b16 %v2117
    %v2289 = vunpack.c.l.b16 %v2118
    %v2290 = vunpack.c.h.b16 %v2118
    %v2291 = vunpack.c.l.b16 %v2119
    %v2292 = vunpack.c.h.b16 %v2119
    %v2293 = vunpack.c.l.b16 %v2120
    %v2294 = vunpack.c.h.b16 %v2120
    %v2295 = vunpack.c.l.b16 %v2121
    %v2296 = vunpack.c.h.b16 %v2121
    %v2297 = vunpack.c.l.b16 %v2122
    %v2298 = vunpack.c.h.b16 %v2122
    %v2299 = vunpack.c.l.b16 %v2123
    %v2300 = vunpack.c.h.b16 %v2123
    %v2301 = vunpack.c.l.b16 %v2124
    %v2302 = vunpack.c.h.b16 %v2124
    %v2303 = vunpack.c.l.b16 %v2125
    %v2304 = vunpack.c.h.b16 %v2125
    %v2305 = vunpack.c.l.b16 %v2126
    %v2306 = vunpack.c.h.b16 %v2126
    %v2307 = vunpack.c.l.b16 %v2127
    %v2308 = vunpack.c.h.b16 %v2127
    %v2309 = vunpack.c.l.b16 %v2128
    %v2310 = vunpack.c.h.b16 %v2128
    %v2311 = vunpack.c.l.b16 %v2129
    %v2312 = vunpack.c.h.b16 %v2129
    %v2313 = vunpack.c.l.b16 %v2130
    %v2314 = vunpack.c.h.b16 %v2130
    %v2315 = vunpack.c.l.b16 %v2131
    %v2316 = vunpack.c.h.b16 %v2131
    %v2317 = vunpack.c.l.b16 %v2132
    %v2318 = vunpack.c.h.b16 %v2132
    %v2319 = vunpack.c.l.b16 %v2133
    %v2320 = vunpack.c.h.b16 %v2133
    %v2321 = vunpack.c.l.b16 %v2134
    %v2322 = vunpack.c.h.b16 %v2134
    %v2323 = vunpack.c.l.b16 %v2135
    %v2324 = vunpack.c.h.b16 %v2135
    %v2325 = vunpack.c.l.b16 %v2136
    %v2326 = vunpack.c.h.b16 %v2136
    %v2327 = vunpack.c.l.b16 %v2137
    %v2328 = vunpack.c.h.b16 %v2137
    %v2329 = vunpack.c.l.b16 %v2138
    %v2330 = vunpack.c.h.b16 %v2138
    %v2331 = vunpack.c.l.b16 %v2139
    %v2332 = vunpack.c.h.b16 %v2139
    %v2333 = vunpack.c.l.b16 %v2140
    %v2334 = vunpack.c.h.b16 %v2140
    %v2335 = vunpack.c.l.b16 %v2141
    %v2336 = vunpack.c.h.b16 %v2141
    %v2337 = vunpack.c.l.b16 %v2142
    %v2338 = vunpack.c.h.b16 %v2142
    %v2339 = vunpack.c.l.b16 %v2143
    %v2340 = vunpack.c.h.b16 %v2143
    %v2341 = vunpack.c.l.b16 %v2144
    %v2342 = vunpack.c.h.b16 %v2144
    %v2343 = vunpack.c.l.b16 %v2145
    %v2344 = vunpack.c.h.b16 %v2145
    %v2345 = vunpack.c.l.b16 %v2146
    %v2346 = vunpack.c.h.b16 %v2146
    %v2347 = vunpack.c.l.b16 %v2147
    %v2348 = vunpack.c.h.b16 %v2147
    %v2349 = vunpack.c.l.b16 %v2148
    %v2350 = vunpack.c.h.b16 %v2148
    %v2351 = vunpack.c.l.b16 %v2149
    %v2352 = vunpack.c.h.b16 %v2149
    %v2353 = vunpack.c.l.b16 %v2150
    %v2354 = vunpack.c.h.b16 %v2150
    %v2355 = vpack.c.b16 %v2229, %v2227
    %v2356 = vpack.c.b16 %v2230, %v2228
    %v2357 = vpack.c.b16 %v2233, %v2231
    %v2358 = vpack.c.b16 %v2234, %v2232
    %v2359 = vpack.c.b16 %v2237, %v2235
    %v2360 = vpack.c.b16 %v2238, %v2236
    %v2361 = vpack.c.b16 %v2241, %v2239
    %v2362 = vpack.c.b16 %v2242, %v2240
    %v2363 = vpack.c.b16 %v2245, %v2243
    %v2364 = vpack.c.b16 %v2246, %v2244
    %v2365 = vpack.c.b16 %v2249, %v2247
    %v2366 = vpack.c.b16 %v2250, %v2248
    %v2367 = vpack.c.b16 %v2253, %v2251
    %v2368 = vpack.c.b16 %v2254, %v2252
    %v2369 = vpack.c.b16 %v2257, %v2255
    %v2370 = vpack.c.b16 %v2258, %v2256
    %v2371 = vpack.c.b16 %v2261, %v2259
    %v2372 = vpack.c.b16 %v2262, %v2260
    %v2373 = vpack.c.b16 %v2265, %v2263
    %v2374 = vpack.c.b16 %v2266, %v2264
    %v2375 = vpack.c.b16 %v2269, %v2267
    %v2376 = vpack.c.b16 %v2270, %v2268
    %v2377 = vpack.c.b16 %v2273, %v2271
    %v2378 = vpack.c.b16 %v2274, %v2272
    %v2379 = vpack.c.b16 %v2277, %v2275
    %v2380 = vpack.c.b16 %v2278, %v2276
    %v2381 = vpack.c.b16 %v2281, %v2279
    %v2382 = vpack.c.b16 %v2282, %v2280
    %v2383 = vpack.c.b16 %v2285, %v2283
    %v2384 = vpack.c.b16 %v2286, %v2284
    %v2385 = vpack.c.b16 %v2289, %v2287
    %v2386 = vpack.c.b16 %v2290, %v2288
    %v2387 = vpack.c.b16 %v2293, %v2291
    %v2388 = vpack.c.b16 %v2294, %v2292
    %v2389 = vpack.c.b16 %v2297, %v2295
    %v2390 = vpack.c.b16 %v2298, %v2296
    %v2391 = vpack.c.b16 %v2301, %v2299
    %v2392 = vpack.c.b16 %v2302, %v2300
    %v2393 = vpack.c.b16 %v2305, %v2303
    %v2394 = vpack.c.b16 %v2306, %v2304
    %v2395 = vpack.c.b16 %v2309, %v2307
    %v2396 = vpack.c.b16 %v2310, %v2308
    %v2397 = vpack.c.b16 %v2313, %v2311
    %v2398 = vpack.c.b16 %v2314, %v2312
    %v2399 = vpack.c.b16 %v2317, %v2315
    %v2400 = vpack.c.b16 %v2318, %v2316
    %v2401 = vpack.c.b16 %v2321, %v2319
    %v2402 = vpack.c.b16 %v2322, %v2320
    %v2403 = vpack.c.b16 %v2325, %v2323
    %v2404 = vpack.c.b16 %v2326, %v2324
    %v2405 = vpack.c.b16 %v2329, %v2327
    %v2406 = vpack.c.b16 %v2330, %v2328
    %v2407 = vpack.c.b16 %v2333, %v2331
    %v2408 = vpack.c.b16 %v2334, %v2332
    %v2409 = vpack.c.b16 %v2337, %v2335
    %v2410 = vpack.c.b16 %v2338, %v2336
    %v2411 = vpack.c.b16 %v2341, %v2339
    %v2412 = vpack.c.b16 %v2342, %v2340
    %v2413 = vpack.c.b16 %v2345, %v2343
    %v2414 = vpack.c.b16 %v2346, %v2344
    %v2415 = vpack.c.b16 %v2349, %v2347
    %v2416 = vpack.c.b16 %v2350, %v2348
    %v2417 = vpack.c.b16 %v2353, %v2351
    %v2418 = vpack.c.b16 %v2354, %v2352
    %2483 = vmatprep.subr.bf16.mxu0 %v2370
    %2484 = vmatpush1.bf16.msra.mxu0 %v2369
    %2485 = vmatprep.subr.bf16.mxu0 %v2368
    %2486 = vmatpush1.bf16.msra.mxu0 %v2367
    %2487 = vmatprep.subr.bf16.mxu0 %v2366
    %2488 = vmatpush1.bf16.msra.mxu0 %v2365
    %2489 = vmatprep.subr.bf16.mxu0 %v2364
    %2490 = vmatpush1.bf16.msra.mxu0 %v2363
    %2491 = vmatprep.subr.bf16.mxu0 %v2362
    %2492 = vmatpush1.bf16.msra.mxu0 %v2361
    %2493 = vmatprep.subr.bf16.mxu0 %v2360
    %2494 = vmatpush1.bf16.msra.mxu0 %v2359
    %2495 = vmatprep.subr.bf16.mxu0 %v2358
    %2496 = vmatpush1.bf16.msra.mxu0 %v2357
    %2497 = vmatprep.subr.bf16.mxu0 %v2356
    %2498 = vmatpush1.bf16.msra.mxu0 %v2355
    %2499 = vmatprep.subr.bf16.mxu0 %v2386
    %2500 = vmatpush2.bf16.msra.mxu0 %v2385
    %2501 = vmatprep.subr.bf16.mxu0 %v2384
    %2502 = vmatpush2.bf16.msra.mxu0 %v2383
    %2503 = vmatprep.subr.bf16.mxu0 %v2382
    %2504 = vmatpush2.bf16.msra.mxu0 %v2381
    %2505 = vmatprep.subr.bf16.mxu0 %v2380
    %2506 = vmatpush2.bf16.msra.mxu0 %v2379
    %2507 = vmatprep.subr.bf16.mxu0 %v2378
    %2508 = vmatpush2.bf16.msra.mxu0 %v2377
    %2509 = vmatprep.subr.bf16.mxu0 %v2376
    %2510 = vmatpush2.bf16.msra.mxu0 %v2375
    %2511 = vmatprep.subr.bf16.mxu0 %v2374
    %2512 = vmatpush2.bf16.msra.mxu0 %v2373
    %2513 = vmatprep.subr.bf16.mxu0 %v2372
    %2514 = vmatpush2.bf16.msra.mxu0 %v2371
    %2515 = vmatprep.mubr.bf16.mxu0 %v2080
    %2516 = vmatmul.mubr.bf16.gmra.mxu0 %v2079
    %v2517 = vpop.f32.mrf.mxu0
    %v2518 = vadd.f32 %v2156, %v2517
    %v2519 = vpop.f32.mrf.mxu0
    %v2520 = vadd.f32 %v2160, %v2519
    %v2521 = vpop.f32.mrf.mxu0
    %v2522 = vadd.f32 %v2156, %v2521
    %v2523 = vpop.f32.mrf.mxu0
    %v2524 = vadd.f32 %v2160, %v2523
    %2525 = vmatprep.mubr.bf16.mxu0 %v2084
    %2526 = vmatmul.mubr.bf16.gmra.mxu0 %v2083
    %v2527 = vpop.f32.mrf.mxu0
    %v2528 = vadd.f32 %v2156, %v2527
    %v2529 = vpop.f32.mrf.mxu0
    %v2530 = vadd.f32 %v2160, %v2529
    %v2531 = vpop.f32.mrf.mxu0
    %v2532 = vadd.f32 %v2156, %v2531
    %v2533 = vpop.f32.mrf.mxu0
    %v2534 = vadd.f32 %v2160, %v2533
    %2535 = vdwg.mxu0
    %2536 = vmatprep.subr.bf16.mxu0 %v2402
    %2537 = vmatpush1.bf16.msra.mxu0 %v2401
    %2538 = vmatprep.subr.bf16.mxu0 %v2400
    %2539 = vmatpush1.bf16.msra.mxu0 %v2399
    %2540 = vmatprep.subr.bf16.mxu0 %v2398
    %2541 = vmatpush1.bf16.msra.mxu0 %v2397
    %2542 = vmatprep.subr.bf16.mxu0 %v2396
    %2543 = vmatpush1.bf16.msra.mxu0 %v2395
    %2544 = vmatprep.subr.bf16.mxu0 %v2394
    %2545 = vmatpush1.bf16.msra.mxu0 %v2393
    %2546 = vmatprep.subr.bf16.mxu0 %v2392
    %2547 = vmatpush1.bf16.msra.mxu0 %v2391
    %2548 = vmatprep.subr.bf16.mxu0 %v2390
    %2549 = vmatpush1.bf16.msra.mxu0 %v2389
    %2550 = vmatprep.subr.bf16.mxu0 %v2388
    %2551 = vmatpush1.bf16.msra.mxu0 %v2387
    %2552 = vmatprep.subr.bf16.mxu0 %v2418
    %2553 = vmatpush2.bf16.msra.mxu0 %v2417
    %2554 = vmatprep.subr.bf16.mxu0 %v2416
    %2555 = vmatpush2.bf16.msra.mxu0 %v2415
    %2556 = vmatprep.subr.bf16.mxu0 %v2414
    %2557 = vmatpush2.bf16.msra.mxu0 %v2413
    %2558 = vmatprep.subr.bf16.mxu0 %v2412
    %2559 = vmatpush2.bf16.msra.mxu0 %v2411
    %2560 = vmatprep.subr.bf16.mxu0 %v2410
    %2561 = vmatpush2.bf16.msra.mxu0 %v2409
    %2562 = vmatprep.subr.bf16.mxu0 %v2408
    %2563 = vmatpush2.bf16.msra.mxu0 %v2407
    %2564 = vmatprep.subr.bf16.mxu0 %v2406
    %2565 = vmatpush2.bf16.msra.mxu0 %v2405
    %2566 = vmatprep.subr.bf16.mxu0 %v2404
    %2567 = vmatpush2.bf16.msra.mxu0 %v2403
    %2568 = vmatprep.mubr.bf16.mxu0 %v2082
    %2569 = vmatmul.mubr.bf16.gmra.mxu0 %v2081
    %v2570 = vpop.f32.mrf.mxu0
    %v2571 = vadd.f32 %v2518, %v2570
    %v2572 = vpop.f32.mrf.mxu0
    %v2573 = vadd.f32 %v2520, %v2572
    %v2574 = vpop.f32.mrf.mxu0
    %v2575 = vadd.f32 %v2522, %v2574
    %v2576 = vpop.f32.mrf.mxu0
    %v2577 = vadd.f32 %v2524, %v2576
    %2578 = vmatprep.mubr.bf16.mxu0 %v2086
    %2579 = vmatmul.mubr.bf16.gmra.mxu0 %v2085
    %v2580 = vpop.f32.mrf.mxu0
    %v2581 = vadd.f32 %v2528, %v2580
    %v2582 = vpop.f32.mrf.mxu0
    %v2583 = vadd.f32 %v2530, %v2582
    %v2584 = vpop.f32.mrf.mxu0
    %v2585 = vadd.f32 %v2532, %v2584
    %v2586 = vpop.f32.mrf.mxu0
    %v2587 = vadd.f32 %v2534, %v2586
    %2588 = vdwg.mxu0
    %v2589 = vadd.f32 %v2571, %v92
    %v2590 = vadd.f32 %v2573, %v93
    %v2591 = vadd.f32 %v2575, %v94
    %v2592 = vadd.f32 %v2577, %v95
    %v2593 = vadd.f32 %v2581, %v96
    %v2594 = vadd.f32 %v2583, %v97
    %v2595 = vadd.f32 %v2585, %v98
    %v2596 = vadd.f32 %v2587, %v99
    %2597 = vst [vmem:[#allocation10] sm:$0xff] %v2589
    %2598 = vst [vmem:[#allocation10 + $0x8] sm:$0xff] %v2590
    %2599 = vst [vmem:[#allocation10 + $0x10] sm:$0xff] %v2591
    %2600 = vst [vmem:[#allocation10 + $0x18] sm:$0xff] %v2592
    %2601 = vst [vmem:[#allocation10 + $0x20] sm:$0xff] %v2593
    %2602 = vst [vmem:[#allocation10 + $0x28] sm:$0xff] %v2594
    %2603 = vst [vmem:[#allocation10 + $0x30] sm:$0xff] %v2595
    %2604 = vst [vmem:[#allocation10 + $0x38] sm:$0xff] %v2596
    // Predicated region
    $region62: #{tpu_custom_call.1} parent=1 // pred_check
      _
    $region63: #{tpu_custom_call.1} parent=1 // pred_check_branch
      %2606 = sbr.rel (0) target = $region65
    $region64: #{tpu_custom_call.1} parent=1 // pred_region
      %s2608 = ssub.s32 1024, 1024
      %2609 = vsyncadd [#allocation4], %s2608
      %s2610 = sshll.u32 [#allocation10], 4
      %s2611 = int_to_ptr.vmem [resolvable:$true] %s2610
      %2616 = dma.vmem_to_hbm [thread:$0]  %s2611, 1024, %s11, [#allocation4], 256, 256, 16
    $region65: #{tpu_custom_call.1} parent=1 // pred_fallthru
      _
    // Predicated region
    $region66: #{tpu_custom_call.1} parent=1 // pred_check
      _
    $region67: #{tpu_custom_call.1} parent=1 // pred_check_branch
      %2618 = sbr.rel (0) target = $region69
    $region68: #{tpu_custom_call.1} parent=1 // pred_region
      %2619 = dma.done [#allocation4], 1024
    $region69: #{tpu_custom_call.1} parent=1 // pred_fallthru
      _
    %2620 = vsyncpa [#allocation3], 1
    %2621 = vsyncpa [#allocation6], 1
    %2622 = vsyncpa [#allocation9], 1
    %2623 = vsyncpa [#allocation4], 1

</llo_original>
